<compile_context>
chip_gen: v7x
topology: tpu7x:2x2x1
jax: 0.10.0
libtpu: 0.0.40
codegen_flags: <defaults>
</compile_context>

<pallas_src>
import functools
import math

import jax
import jax.numpy as jnp
import numpy as np
from jax import lax
from jax.experimental import pallas as pl
from jax.experimental.pallas import tpu as pltpu


def _cross_attention_kernel(q_ref, k_ref, v_ref, vq_ref, pm_ref,
                            wqp_ref, bqp_ref, wkp_ref, bkp_ref,
                            wqo_ref, wkv_ref, o_ref,
                            *, num_heads, n_layers):
    # Per-grid-step block shapes (rq = block_b*Nq, rk = block_b*Nk):
    #   q_ref: (rq, Dq_p)  k_ref: (rk, Dk_p)  v_ref: (rk, Dv)                    (f32)
    #   vq_ref: (rq, 1)    1.0 == valid query row                                 (f32)
    #   pm_ref: (rq, rk)   block-diagonal 0/1 pair mask (off-diag batch blocks 0) (f32)
    #   wqp_ref: (Dq_p, Dv)  wkp_ref: (Dk_p, Dv)  b*_ref: (1, Dv)                 (bf16 / f32)
    #   wqo_ref: (L, Dv, 2Dv) bf16 = [fc_q^T | fc_o^T]
    #   wkv_ref: (L, 2Dv, 2Dv) bf16 block-diag [[fc_k^T/sqrt(Dv), 0], [0, fc_v^T]]
    #   o_ref:  (rq, Dv)
    f32 = jnp.float32
    bf16 = jnp.bfloat16
    D = v_ref.shape[-1]
    ds = D // num_heads

    valid_q = vq_ref[...]                                   # (rq, 1)
    pmask = pm_ref[...]                                     # (rq, rk) 0/1
    neg_bias = (pmask - 1.0) * jnp.float32(1e38)            # 0 valid, -1e38 masked/off-diag

    # CrossAttention input projections (with bias): bf16 MXU inputs, f32 accumulation.
    q_cur = jnp.dot(q_ref[...].astype(bf16), wqp_ref[...],
                    preferred_element_type=f32) + bqp_ref[...]          # (rq, Dv)
    k_base = jnp.dot(k_ref[...].astype(bf16), wkp_ref[...],
                     preferred_element_type=f32) + bkp_ref[...]         # (rk, Dv)
    # Layer-invariant fused K|V LHS (one concat total, reused by every layer's fc_k/fc_v).
    kv_base = jnp.concatenate([k_base.astype(bf16), v_ref[...].astype(bf16)],
                              axis=-1)                                  # (rk, 2Dv)

    for l in range(n_layers):                               # static, unrolled (small L)
        w_qo = wqo_ref[l]                                   # (Dv, 2Dv)
        w_kv = wkv_ref[l]                                   # (2Dv, 2Dv)

        # masked_fill(mask_Q, 0) on the layer input, then fc_q; fused fc_k/fc_v.
        qm = (q_cur * valid_q).astype(bf16)
        qp = jnp.dot(qm, w_qo[:, :D], preferred_element_type=f32)       # (rq, Dv)
        kvp = jnp.dot(kv_base, w_kv, preferred_element_type=f32)        # (rk, 2Dv)
        qp_b = qp.astype(bf16)
        kp = kvp[:, :D].astype(bf16)                                    # scale already folded
        vp = kvp[:, D:].astype(bf16)

        head_outs = []
        for h in range(num_heads):                          # static head loop, 8-lane slices
            qh = qp_b[:, h * ds:(h + 1) * ds]
            kh = kp[:, h * ds:(h + 1) * ds]
            vh = vp[:, h * ds:(h + 1) * ds]
            # Cross-batch scores: one matmul over the whole slab, RHS consumed transposed.
            s = lax.dot_general(qh, kh, (((1,), (1,)), ((), ())),
                                preferred_element_type=f32)             # (rq, rk)
            s = s + neg_bias                                 # masked_fill(mask, -1e38)
            m = jnp.max(s, axis=-1, keepdims=True)
            p = jnp.exp(s - m)
            denom = jnp.sum(p, axis=-1, keepdims=True)
            a = p * pl.reciprocal(denom, approx=True)        # softmax over keys (EUP recip)
            a = a * pmask                                    # masked_fill(mask, 0); off-diag -> 0
            head_outs.append(jnp.dot(a.astype(bf16), vh,
                                     preferred_element_type=f32))       # (rq, ds)
        attn = jnp.concatenate(head_outs, axis=-1)                      # (rq, Dv)

        # Residual 1 (dropouts are identity in eval mode).
        o1 = qp + attn
        # Residual 2: relu(masked_forward(fc_o, O1, mask_Q)); relu(0)==0, so zeroing the masked
        # query rows after the relu is equivalent.
        fo = jnp.dot(o1.astype(bf16), w_qo[:, D:], preferred_element_type=f32)
        q_cur = o1 + jnp.maximum(fo, 0.0) * valid_q

    o_ref[...] = q_cur.astype(o_ref.dtype)


def _pick_block_b(B, Nq, Nk):
    """Batch elements per grid step.

    Largest divisor of B with block_b*max(Nq,Nk) <= 128 so the f32 cross-batch score tile stays
    <= 16 vregs and within one v5e MXU pass.  grid = 1 is allowed (best for single-TC v5e/v6e);
    on v7x pass block_b = B // 2 explicitly to keep both TensorCores busy.
    """
    rows = max(Nq, Nk)
    best = 1
    for d in range(1, B + 1):
        if B % d == 0 and d * rows <= 128:
            best = d
    return best


def cross_attention_pallas(Q, K, V, mask_Q, mask_K,
                           qproj_w, qproj_b, kproj_w, kproj_b,
                           attn_wq, attn_wk, attn_wv, attn_wo,
                           *, num_heads=4, block_b=None):
    """CrossAttention forward.

    Q: (B, Nq, Dq); K: (B, Nk, Dk); V: (B, Nk, Dv); mask_*: bool, True == masked.
    qproj_w: (Dv, Dq), qproj_b: (Dv,); kproj_w: (Dv, Dk), kproj_b: (Dv,).
    attn_w{q,k,v,o}: (n_layers, Dv, Dv) stacked PyTorch-layout (out, in) weights, bias=False.
    """
    B, Nq, Dq = Q.shape
    _, Nk, Dk = K.shape
    Dv = V.shape[-1]
    L = attn_wq.shape[0]
    assert Dv % num_heads == 0

    if block_b is None:
        block_b = _pick_block_b(B, Nq, Nk)
    assert B % block_b == 0
    grid_steps = B // block_b
    rq, rk = block_b * Nq, block_b * Nk
    if grid_steps > 1:
        # (8,128) rule: sub-array blocks need sublane-aligned row counts.
        assert rq % 8 == 0 and rk % 8 == 0, "Nq/Nk must make block rows a multiple of 8"

    f32 = jnp.float32
    bf16 = jnp.bfloat16

    # Zero-pad the two input-projection contraction dims to a multiple of 16 (bf16 sublane tile).
    Dq_p = Dq + (-Dq) % 16
    Dk_p = Dk + (-Dk) % 16

    # Activations flattened to 2-D row-major slabs (f32 at the boundary; bf16 inside for the MXU).
    q2 = Q.reshape(B * Nq, Dq).astype(f32)
    k2 = K.reshape(B * Nk, Dk).astype(f32)
    v2 = V.reshape(B * Nk, Dv).astype(f32)
    if Dq_p != Dq:
        q2 = jnp.pad(q2, ((0, 0), (0, Dq_p - Dq)))
    if Dk_p != Dk:
        k2 = jnp.pad(k2, ((0, 0), (0, Dk_p - Dk)))

    # Valid-query column and the block-diagonal 0/1 pair mask (per grid step), built once here.
    vq_b = 1.0 - mask_Q.astype(f32)                                      # (B, Nq)
    vk_b = 1.0 - mask_K.astype(f32)                                      # (B, Nk)
    vq = vq_b.reshape(B * Nq, 1)
    eye = jnp.eye(block_b, dtype=f32)
    pv = (vq_b.reshape(grid_steps, block_b, Nq)[:, :, None, :, None]
          * vk_b.reshape(grid_steps, block_b, Nk)[:, None, :, None, :])  # (G, bi, bj, Nq, Nk)
    pv = pv * eye[None, :, :, None, None]                                # zero off-diagonal blocks
    pmask = pv.transpose(0, 1, 3, 2, 4).reshape(B * Nq, rk)              # (B*Nq, block_b*Nk)

    # Pre-transposed bf16 weights (kernel does plain x @ W); zero rows match the Dq/Dk padding.
    wqp_t = jnp.pad(qproj_w, ((0, 0), (0, Dq_p - Dq))).T.astype(bf16)    # (Dq_p, Dv)
    wkp_t = jnp.pad(kproj_w, ((0, 0), (0, Dk_p - Dk))).T.astype(bf16)    # (Dk_p, Dv)
    bqp = qproj_b.reshape(1, Dv).astype(f32)
    bkp = kproj_b.reshape(1, Dv).astype(f32)

    # Packed per-layer weights: [fc_q^T | fc_o^T] and block-diag fused [fc_k^T/sqrt(Dv), fc_v^T].
    wq_t = jnp.transpose(attn_wq, (0, 2, 1))
    wo_t = jnp.transpose(attn_wo, (0, 2, 1))
    wk_t = jnp.transpose(attn_wk, (0, 2, 1)) * (1.0 / math.sqrt(Dv))
    wv_t = jnp.transpose(attn_wv, (0, 2, 1))
    w_qo = jnp.concatenate([wq_t, wo_t], axis=-1).astype(bf16)           # (L, Dv, 2Dv)
    zeros = jnp.zeros((L, Dv, Dv), f32)
    w_kv = jnp.concatenate([jnp.concatenate([wk_t, zeros], axis=-1),
                            jnp.concatenate([zeros, wv_t], axis=-1)],
                           axis=1).astype(bf16)                          # (L, 2Dv, 2Dv)

    kernel = functools.partial(_cross_attention_kernel, num_heads=num_heads, n_layers=L)

    out = pl.pallas_call(
        kernel,
        out_shape=jax.ShapeDtypeStruct((B * Nq, Dv), f32),
        grid_spec=pltpu.PrefetchScalarGridSpec(
            num_scalar_prefetch=0,
            grid=(grid_steps,),
            in_specs=[
                pl.BlockSpec((rq, Dq_p), lambda b: (b, 0)),               # Q rows
                pl.BlockSpec((rk, Dk_p), lambda b: (b, 0)),               # K rows
                pl.BlockSpec((rk, Dv), lambda b: (b, 0)),                 # V rows
                pl.BlockSpec((rq, 1), lambda b: (b, 0)),                  # valid_q
                pl.BlockSpec((rq, rk), lambda b: (b, 0)),                 # block-diag pair mask
                pl.BlockSpec((Dq_p, Dv), lambda b: (0, 0)),               # W_qproj^T
                pl.BlockSpec((1, Dv), lambda b: (0, 0)),                  # b_qproj
                pl.BlockSpec((Dk_p, Dv), lambda b: (0, 0)),               # W_kproj^T
                pl.BlockSpec((1, Dv), lambda b: (0, 0)),                  # b_kproj
                pl.BlockSpec((L, Dv, 2 * Dv), lambda b: (0, 0, 0)),       # [fc_q^T | fc_o^T]
                pl.BlockSpec((L, 2 * Dv, 2 * Dv), lambda b: (0, 0, 0)),   # block-diag fc_k/fc_v
            ],
            out_specs=pl.BlockSpec((rq, Dv), lambda b: (b, 0)),           # 2-D output slab
        ),
        compiler_params=pltpu.CompilerParams(
            dimension_semantics=("parallel",),
            vmem_limit_bytes=48 * 1024 * 1024),
    )(q2, k2, v2, vq, pmask, wqp_t, bqp, wkp_t, bkp, w_qo, w_kv)

    return out.reshape(B, Nq, Dv)


# ----------------------------- pure-JAX reference ----------------------------- #

def _attention_ref(Q, K, V, mask_Q, mask_K, wq, wk, wv, wo, *, num_heads):
    B, Nq, D = Q.shape
    Nk = K.shape[1]
    ds = D // num_heads
    vq = 1.0 - mask_Q.astype(jnp.float32)
    vk = 1.0 - mask_K.astype(jnp.float32)

    Qm = Q * vq[..., None]
    Km = K * vk[..., None]
    Vm = V * vk[..., None]
    Qp = Qm @ wq.T
    Kp = Km @ wk.T
    Vp = Vm @ wv.T

    Qh = Qp.reshape(B, Nq, num_heads, ds).transpose(0, 2, 1, 3)
    Kh = Kp.reshape(B, Nk, num_heads, ds).transpose(0, 2, 1, 3)
    Vh = Vp.reshape(B, Nk, num_heads, ds).transpose(0, 2, 1, 3)

    s = jnp.einsum('bhqd,bhkd->bhqk', Qh, Kh) / math.sqrt(D)
    pv = vq[:, None, :, None] * vk[:, None, None, :]
    s = jnp.where(pv > 0, s, jnp.float32(-1e38))
    a = jax.nn.softmax(s, axis=-1) * pv
    attn = jnp.einsum('bhqk,bhkd->bhqd', a, Vh).transpose(0, 2, 1, 3).reshape(B, Nq, D)

    O1 = Qp + attn
    return O1 + jnp.maximum(O1 @ wo.T, 0.0) * vq[..., None]


def cross_attention_ref(Q, K, V, mask_Q, mask_K, qproj_w, qproj_b, kproj_w, kproj_b,
                        attn_wq, attn_wk, attn_wv, attn_wo, *, num_heads=4):
    Qc = Q @ qproj_w.T + qproj_b
    Kc = K @ kproj_w.T + kproj_b
    for l in range(attn_wq.shape[0]):
        Qc = _attention_ref(Qc, Kc, V, mask_Q, mask_K,
                            attn_wq[l], attn_wk[l], attn_wv[l], attn_wo[l],
                            num_heads=num_heads)
    return Qc


if __name__ == "__main__":
    B, Nq, Nk = 2, 8, 8
    Dq, Dk, Dv = 16, 24, 32
    H, L = 4, 2

    key = jax.random.PRNGKey(0)
    ks = jax.random.split(key, 13)

    Q = jax.random.normal(ks[0], (B, Nq, Dq), dtype=jnp.float32)
    K = jax.random.normal(ks[1], (B, Nk, Dk), dtype=jnp.float32)
    V = jax.random.normal(ks[2], (B, Nk, Dv), dtype=jnp.float32)

    # True == masked (same convention as the PyTorch module).
    mask_Q = jax.random.uniform(ks[3], (B, Nq)) < 0.25
    mask_K = jax.random.uniform(ks[4], (B, Nk)) < 0.25

    def lin_w(k, out_dim, in_dim):
        bound = 1.0 / math.sqrt(in_dim)
        return jax.random.uniform(k, (out_dim, in_dim), minval=-bound, maxval=bound,
                                  dtype=jnp.float32)

    def lin_b(k, out_dim, in_dim):
        bound = 1.0 / math.sqrt(in_dim)
        return jax.random.uniform(k, (out_dim,), minval=-bound, maxval=bound,
                                  dtype=jnp.float32)

    def lin_stack(k, n, dim):
        bound = 1.0 / math.sqrt(dim)
        return jax.random.uniform(k, (n, dim, dim), minval=-bound, maxval=bound,
                                  dtype=jnp.float32)

    qproj_w = lin_w(ks[5], Dv, Dq)
    qproj_b = lin_b(ks[6], Dv, Dq)
    kproj_w = lin_w(ks[7], Dv, Dk)
    kproj_b = lin_b(ks[8], Dv, Dk)
    attn_wq = lin_stack(ks[9], L, Dv)
    attn_wk = lin_stack(ks[10], L, Dv)
    attn_wv = lin_stack(ks[11], L, Dv)
    attn_wo = lin_stack(ks[12], L, Dv)

    out = cross_attention_pallas(Q, K, V, mask_Q, mask_K,
                                 qproj_w, qproj_b, kproj_w, kproj_b,
                                 attn_wq, attn_wk, attn_wv, attn_wo, num_heads=H)
    out = jax.block_until_ready(out)

    ref = cross_attention_ref(Q, K, V, mask_Q, mask_K,
                              qproj_w, qproj_b, kproj_w, kproj_b,
                              attn_wq, attn_wk, attn_wv, attn_wo, num_heads=H)

    # bf16 MXU inputs + approx EUP reciprocal vs. a pure-f32 reference -> slightly wider tolerance.
    np.testing.assert_allclose(np.asarray(out), np.asarray(ref), rtol=2e-2, atol=2e-2)

    print("KERNEL_OK")
</pallas_src>

<mosaic_0001>
module attributes {stable_mosaic.version = 11 : i64} {
  func.func @_cross_attention_kernel(%arg0: i32, %arg1: memref<16x16xf32, #tpu.memory_space<vmem>>, %arg2: memref<16x32xf32, #tpu.memory_space<vmem>>, %arg3: memref<16x32xf32, #tpu.memory_space<vmem>>, %arg4: memref<16x1xf32, #tpu.memory_space<vmem>>, %arg5: memref<16x16xf32, #tpu.memory_space<vmem>>, %arg6: memref<16x32xbf16, #tpu.memory_space<vmem>>, %arg7: memref<1x32xf32, #tpu.memory_space<vmem>>, %arg8: memref<32x32xbf16, #tpu.memory_space<vmem>>, %arg9: memref<1x32xf32, #tpu.memory_space<vmem>>, %arg10: memref<2x32x64xbf16, #tpu.memory_space<vmem>>, %arg11: memref<2x64x64xbf16, #tpu.memory_space<vmem>>, %arg12: memref<16x32xf32, #tpu.memory_space<vmem>>) attributes {dimension_semantics = [#tpu.dimension_semantics<parallel>], iteration_bounds = array<i64: 1>, scalar_prefetch = 0 : i64, scratch_operands = 0 : i64, tpu.core_type = #tpu.core_type<tc>, window_params = [{transform_indices = @transform_0, window_bounds = array<i64: 16, 16>}, {transform_indices = @transform_1, window_bounds = array<i64: 16, 32>}, {transform_indices = @transform_2, window_bounds = array<i64: 16, 32>}, {transform_indices = @transform_3, window_bounds = array<i64: 16, 1>}, {transform_indices = @transform_4, window_bounds = array<i64: 16, 16>}, {pipeline_mode = #tpu.pipeline_mode<synchronous>, transform_indices = @transform_5, window_bounds = array<i64: 16, 32>}, {pipeline_mode = #tpu.pipeline_mode<synchronous>, transform_indices = @transform_6, window_bounds = array<i64: 1, 32>}, {pipeline_mode = #tpu.pipeline_mode<synchronous>, transform_indices = @transform_7, window_bounds = array<i64: 32, 32>}, {pipeline_mode = #tpu.pipeline_mode<synchronous>, transform_indices = @transform_8, window_bounds = array<i64: 1, 32>}, {pipeline_mode = #tpu.pipeline_mode<synchronous>, transform_indices = @transform_9, window_bounds = array<i64: 2, 32, 64>}, {pipeline_mode = #tpu.pipeline_mode<synchronous>, transform_indices = @transform_10, window_bounds = array<i64: 2, 64, 64>}, {transform_indices = @transform_11, window_bounds = array<i64: 16, 32>}]} {
    %c0 = arith.constant 0 : index
    %c0_0 = arith.constant 0 : index
    %0 = vector.load %arg4[%c0, %c0_0] : memref<16x1xf32, #tpu.memory_space<vmem>>, vector<16x1xf32>
    %c0_1 = arith.constant 0 : index
    %c0_2 = arith.constant 0 : index
    %1 = vector.load %arg5[%c0_1, %c0_2] : memref<16x16xf32, #tpu.memory_space<vmem>>, vector<16x16xf32>
    %cst = arith.constant 1.000000e+00 : f32
    %2 = vector.broadcast %cst : f32 to vector<16x16xf32>
    %3 = arith.subf %1, %2 : vector<16x16xf32>
    %cst_3 = arith.constant 9.99999968E+37 : f32
    %4 = vector.broadcast %cst_3 : f32 to vector<16x16xf32>
    %5 = arith.mulf %3, %4 : vector<16x16xf32>
    %c0_4 = arith.constant 0 : index
    %c0_5 = arith.constant 0 : index
    %6 = vector.load %arg1[%c0_4, %c0_5] : memref<16x16xf32, #tpu.memory_space<vmem>>, vector<16x16xf32>
    %7 = arith.truncf %6 : vector<16x16xf32> to vector<16x16xbf16>
    %c0_6 = arith.constant 0 : index
    %c0_7 = arith.constant 0 : index
    %8 = vector.load %arg6[%c0_6, %c0_7] : memref<16x32xbf16, #tpu.memory_space<vmem>>, vector<16x32xbf16>
    %cst_8 = arith.constant dense<0.000000e+00> : vector<16x32xf32>
    %9 = tpu.matmul %7, %8, %cst_8 {dimension_numbers = #tpu.dot_dimension_numbers<[1], [0], [0], [1], [0, 0, 1, 1], [], []>} : vector<16x16xbf16>, vector<16x32xbf16>, vector<16x32xf32> -> vector<16x32xf32>
    %c0_9 = arith.constant 0 : index
    %c0_10 = arith.constant 0 : index
    %10 = vector.load %arg7[%c0_9, %c0_10] : memref<1x32xf32, #tpu.memory_space<vmem>>, vector<1x32xf32>
    %11 = vector.broadcast %10 : vector<1x32xf32> to vector<16x32xf32>
    %12 = arith.addf %9, %11 : vector<16x32xf32>
    %c0_11 = arith.constant 0 : index
    %c0_12 = arith.constant 0 : index
    %13 = vector.load %arg2[%c0_11, %c0_12] : memref<16x32xf32, #tpu.memory_space<vmem>>, vector<16x32xf32>
    %14 = arith.truncf %13 : vector<16x32xf32> to vector<16x32xbf16>
    %c0_13 = arith.constant 0 : index
    %c0_14 = arith.constant 0 : index
    %15 = vector.load %arg8[%c0_13, %c0_14] : memref<32x32xbf16, #tpu.memory_space<vmem>>, vector<32x32xbf16>
    %cst_15 = arith.constant dense<0.000000e+00> : vector<16x32xf32>
    %16 = tpu.matmul %14, %15, %cst_15 {dimension_numbers = #tpu.dot_dimension_numbers<[1], [0], [0], [1], [0, 0, 1, 1], [], []>} : vector<16x32xbf16>, vector<32x32xbf16>, vector<16x32xf32> -> vector<16x32xf32>
    %c0_16 = arith.constant 0 : index
    %c0_17 = arith.constant 0 : index
    %17 = vector.load %arg9[%c0_16, %c0_17] : memref<1x32xf32, #tpu.memory_space<vmem>>, vector<1x32xf32>
    %18 = vector.broadcast %17 : vector<1x32xf32> to vector<16x32xf32>
    %19 = arith.addf %16, %18 : vector<16x32xf32>
    %20 = arith.truncf %19 : vector<16x32xf32> to vector<16x32xbf16>
    %c0_18 = arith.constant 0 : index
    %c0_19 = arith.constant 0 : index
    %21 = vector.load %arg3[%c0_18, %c0_19] : memref<16x32xf32, #tpu.memory_space<vmem>>, vector<16x32xf32>
    %22 = arith.truncf %21 : vector<16x32xf32> to vector<16x32xbf16>
    %23 = tpu.concatenate %20, %22 in 1 : vector<16x32xbf16>, vector<16x32xbf16> -> vector<16x64xbf16>
    %c0_20 = arith.constant 0 : index
    %c0_21 = arith.constant 0 : index
    %c0_22 = arith.constant 0 : index
    %24 = vector.load %arg10[%c0_20, %c0_21, %c0_22] : memref<2x32x64xbf16, #tpu.memory_space<vmem>>, vector<1x32x64xbf16>
    %25 = vector.shape_cast %24 : vector<1x32x64xbf16> to vector<32x64xbf16>
    %c0_23 = arith.constant 0 : index
    %c0_24 = arith.constant 0 : index
    %c0_25 = arith.constant 0 : index
    %26 = vector.load %arg11[%c0_23, %c0_24, %c0_25] : memref<2x64x64xbf16, #tpu.memory_space<vmem>>, vector<1x64x64xbf16>
    %27 = vector.shape_cast %26 : vector<1x64x64xbf16> to vector<64x64xbf16>
    %28 = vector.broadcast %0 : vector<16x1xf32> to vector<16x32xf32>
    %29 = arith.mulf %12, %28 : vector<16x32xf32>
    %30 = arith.truncf %29 : vector<16x32xf32> to vector<16x32xbf16>
    %31 = vector.extract_strided_slice %25 {offsets = [0, 0], sizes = [32, 32], strides = [1, 1]} : vector<32x64xbf16> to vector<32x32xbf16>
    %cst_26 = arith.constant dense<0.000000e+00> : vector<16x32xf32>
    %32 = tpu.matmul %30, %31, %cst_26 {dimension_numbers = #tpu.dot_dimension_numbers<[1], [0], [0], [1], [0, 0, 1, 1], [], []>} : vector<16x32xbf16>, vector<32x32xbf16>, vector<16x32xf32> -> vector<16x32xf32>
    %cst_27 = arith.constant dense<0.000000e+00> : vector<16x64xf32>
    %33 = tpu.matmul %23, %27, %cst_27 {dimension_numbers = #tpu.dot_dimension_numbers<[1], [0], [0], [1], [0, 0, 1, 1], [], []>} : vector<16x64xbf16>, vector<64x64xbf16>, vector<16x64xf32> -> vector<16x64xf32>
    %34 = arith.truncf %32 : vector<16x32xf32> to vector<16x32xbf16>
    %35 = vector.extract_strided_slice %33 {offsets = [0, 0], sizes = [16, 32], strides = [1, 1]} : vector<16x64xf32> to vector<16x32xf32>
    %36 = arith.truncf %35 : vector<16x32xf32> to vector<16x32xbf16>
    %37 = vector.extract_strided_slice %33 {offsets = [0, 32], sizes = [16, 32], strides = [1, 1]} : vector<16x64xf32> to vector<16x32xf32>
    %38 = arith.truncf %37 : vector<16x32xf32> to vector<16x32xbf16>
    %39 = vector.extract_strided_slice %34 {offsets = [0, 0], sizes = [16, 8], strides = [1, 1]} : vector<16x32xbf16> to vector<16x8xbf16>
    %40 = vector.extract_strided_slice %36 {offsets = [0, 0], sizes = [16, 8], strides = [1, 1]} : vector<16x32xbf16> to vector<16x8xbf16>
    %41 = vector.extract_strided_slice %38 {offsets = [0, 0], sizes = [16, 8], strides = [1, 1]} : vector<16x32xbf16> to vector<16x8xbf16>
    %cst_28 = arith.constant dense<0.000000e+00> : vector<16x16xf32>
    %42 = tpu.matmul %39, %40, %cst_28 {dimension_numbers = #tpu.dot_dimension_numbers<[1], [1], [0], [0], [0, 0, 1, 0], [], []>} : vector<16x8xbf16>, vector<16x8xbf16>, vector<16x16xf32> -> vector<16x16xf32>
    %43 = arith.addf %42, %5 : vector<16x16xf32>
    %cst_29 = arith.constant dense<0xFF800000> : vector<16xf32>
    %44 = vector.multi_reduction <maximumf>, %43, %cst_29 [1] : vector<16x16xf32> to vector<16xf32>
    %45 = vector.shape_cast %44 : vector<16xf32> to vector<16x1xf32>
    %46 = vector.broadcast %45 : vector<16x1xf32> to vector<16x16xf32>
    %47 = arith.subf %43, %46 : vector<16x16xf32>
    %48 = math.exp %47 : vector<16x16xf32>
    %cst_30 = arith.constant dense<0.000000e+00> : vector<16xf32>
    %49 = vector.multi_reduction <add>, %48, %cst_30 [1] : vector<16x16xf32> to vector<16xf32>
    %50 = vector.shape_cast %49 : vector<16xf32> to vector<16x1xf32>
    %51 = tpu.reciprocal %50 {approx = true} : vector<16x1xf32> -> vector<16x1xf32>
    %52 = vector.broadcast %51 : vector<16x1xf32> to vector<16x16xf32>
    %53 = arith.mulf %48, %52 : vector<16x16xf32>
    %54 = arith.mulf %53, %1 : vector<16x16xf32>
    %55 = arith.truncf %54 : vector<16x16xf32> to vector<16x16xbf16>
    %cst_31 = arith.constant dense<0.000000e+00> : vector<16x8xf32>
    %56 = tpu.matmul %55, %41, %cst_31 {dimension_numbers = #tpu.dot_dimension_numbers<[1], [0], [0], [1], [0, 0, 1, 1], [], []>} : vector<16x16xbf16>, vector<16x8xbf16>, vector<16x8xf32> -> vector<16x8xf32>
    %57 = vector.extract_strided_slice %34 {offsets = [0, 8], sizes = [16, 8], strides = [1, 1]} : vector<16x32xbf16> to vector<16x8xbf16>
    %58 = vector.extract_strided_slice %36 {offsets = [0, 8], sizes = [16, 8], strides = [1, 1]} : vector<16x32xbf16> to vector<16x8xbf16>
    %59 = vector.extract_strided_slice %38 {offsets = [0, 8], sizes = [16, 8], strides = [1, 1]} : vector<16x32xbf16> to vector<16x8xbf16>
    %cst_32 = arith.constant dense<0.000000e+00> : vector<16x16xf32>
    %60 = tpu.matmul %57, %58, %cst_32 {dimension_numbers = #tpu.dot_dimension_numbers<[1], [1], [0], [0], [0, 0, 1, 0], [], []>} : vector<16x8xbf16>, vector<16x8xbf16>, vector<16x16xf32> -> vector<16x16xf32>
    %61 = arith.addf %60, %5 : vector<16x16xf32>
    %cst_33 = arith.constant dense<0xFF800000> : vector<16xf32>
    %62 = vector.multi_reduction <maximumf>, %61, %cst_33 [1] : vector<16x16xf32> to vector<16xf32>
    %63 = vector.shape_cast %62 : vector<16xf32> to vector<16x1xf32>
    %64 = vector.broadcast %63 : vector<16x1xf32> to vector<16x16xf32>
    %65 = arith.subf %61, %64 : vector<16x16xf32>
    %66 = math.exp %65 : vector<16x16xf32>
    %cst_34 = arith.constant dense<0.000000e+00> : vector<16xf32>
    %67 = vector.multi_reduction <add>, %66, %cst_34 [1] : vector<16x16xf32> to vector<16xf32>
    %68 = vector.shape_cast %67 : vector<16xf32> to vector<16x1xf32>
    %69 = tpu.reciprocal %68 {approx = true} : vector<16x1xf32> -> vector<16x1xf32>
    %70 = vector.broadcast %69 : vector<16x1xf32> to vector<16x16xf32>
    %71 = arith.mulf %66, %70 : vector<16x16xf32>
    %72 = arith.mulf %71, %1 : vector<16x16xf32>
    %73 = arith.truncf %72 : vector<16x16xf32> to vector<16x16xbf16>
    %cst_35 = arith.constant dense<0.000000e+00> : vector<16x8xf32>
    %74 = tpu.matmul %73, %59, %cst_35 {dimension_numbers = #tpu.dot_dimension_numbers<[1], [0], [0], [1], [0, 0, 1, 1], [], []>} : vector<16x16xbf16>, vector<16x8xbf16>, vector<16x8xf32> -> vector<16x8xf32>
    %75 = vector.extract_strided_slice %34 {offsets = [0, 16], sizes = [16, 8], strides = [1, 1]} : vector<16x32xbf16> to vector<16x8xbf16>
    %76 = vector.extract_strided_slice %36 {offsets = [0, 16], sizes = [16, 8], strides = [1, 1]} : vector<16x32xbf16> to vector<16x8xbf16>
    %77 = vector.extract_strided_slice %38 {offsets = [0, 16], sizes = [16, 8], strides = [1, 1]} : vector<16x32xbf16> to vector<16x8xbf16>
    %cst_36 = arith.constant dense<0.000000e+00> : vector<16x16xf32>
    %78 = tpu.matmul %75, %76, %cst_36 {dimension_numbers = #tpu.dot_dimension_numbers<[1], [1], [0], [0], [0, 0, 1, 0], [], []>} : vector<16x8xbf16>, vector<16x8xbf16>, vector<16x16xf32> -> vector<16x16xf32>
    %79 = arith.addf %78, %5 : vector<16x16xf32>
    %cst_37 = arith.constant dense<0xFF800000> : vector<16xf32>
    %80 = vector.multi_reduction <maximumf>, %79, %cst_37 [1] : vector<16x16xf32> to vector<16xf32>
    %81 = vector.shape_cast %80 : vector<16xf32> to vector<16x1xf32>
    %82 = vector.broadcast %81 : vector<16x1xf32> to vector<16x16xf32>
    %83 = arith.subf %79, %82 : vector<16x16xf32>
    %84 = math.exp %83 : vector<16x16xf32>
    %cst_38 = arith.constant dense<0.000000e+00> : vector<16xf32>
    %85 = vector.multi_reduction <add>, %84, %cst_38 [1] : vector<16x16xf32> to vector<16xf32>
    %86 = vector.shape_cast %85 : vector<16xf32> to vector<16x1xf32>
    %87 = tpu.reciprocal %86 {approx = true} : vector<16x1xf32> -> vector<16x1xf32>
    %88 = vector.broadcast %87 : vector<16x1xf32> to vector<16x16xf32>
    %89 = arith.mulf %84, %88 : vector<16x16xf32>
    %90 = arith.mulf %89, %1 : vector<16x16xf32>
    %91 = arith.truncf %90 : vector<16x16xf32> to vector<16x16xbf16>
    %cst_39 = arith.constant dense<0.000000e+00> : vector<16x8xf32>
    %92 = tpu.matmul %91, %77, %cst_39 {dimension_numbers = #tpu.dot_dimension_numbers<[1], [0], [0], [1], [0, 0, 1, 1], [], []>} : vector<16x16xbf16>, vector<16x8xbf16>, vector<16x8xf32> -> vector<16x8xf32>
    %93 = vector.extract_strided_slice %34 {offsets = [0, 24], sizes = [16, 8], strides = [1, 1]} : vector<16x32xbf16> to vector<16x8xbf16>
    %94 = vector.extract_strided_slice %36 {offsets = [0, 24], sizes = [16, 8], strides = [1, 1]} : vector<16x32xbf16> to vector<16x8xbf16>
    %95 = vector.extract_strided_slice %38 {offsets = [0, 24], sizes = [16, 8], strides = [1, 1]} : vector<16x32xbf16> to vector<16x8xbf16>
    %cst_40 = arith.constant dense<0.000000e+00> : vector<16x16xf32>
    %96 = tpu.matmul %93, %94, %cst_40 {dimension_numbers = #tpu.dot_dimension_numbers<[1], [1], [0], [0], [0, 0, 1, 0], [], []>} : vector<16x8xbf16>, vector<16x8xbf16>, vector<16x16xf32> -> vector<16x16xf32>
    %97 = arith.addf %96, %5 : vector<16x16xf32>
    %cst_41 = arith.constant dense<0xFF800000> : vector<16xf32>
    %98 = vector.multi_reduction <maximumf>, %97, %cst_41 [1] : vector<16x16xf32> to vector<16xf32>
    %99 = vector.shape_cast %98 : vector<16xf32> to vector<16x1xf32>
    %100 = vector.broadcast %99 : vector<16x1xf32> to vector<16x16xf32>
    %101 = arith.subf %97, %100 : vector<16x16xf32>
    %102 = math.exp %101 : vector<16x16xf32>
    %cst_42 = arith.constant dense<0.000000e+00> : vector<16xf32>
    %103 = vector.multi_reduction <add>, %102, %cst_42 [1] : vector<16x16xf32> to vector<16xf32>
    %104 = vector.shape_cast %103 : vector<16xf32> to vector<16x1xf32>
    %105 = tpu.reciprocal %104 {approx = true} : vector<16x1xf32> -> vector<16x1xf32>
    %106 = vector.broadcast %105 : vector<16x1xf32> to vector<16x16xf32>
    %107 = arith.mulf %102, %106 : vector<16x16xf32>
    %108 = arith.mulf %107, %1 : vector<16x16xf32>
    %109 = arith.truncf %108 : vector<16x16xf32> to vector<16x16xbf16>
    %cst_43 = arith.constant dense<0.000000e+00> : vector<16x8xf32>
    %110 = tpu.matmul %109, %95, %cst_43 {dimension_numbers = #tpu.dot_dimension_numbers<[1], [0], [0], [1], [0, 0, 1, 1], [], []>} : vector<16x16xbf16>, vector<16x8xbf16>, vector<16x8xf32> -> vector<16x8xf32>
    %111 = tpu.concatenate %56, %74, %92, %110 in 1 : vector<16x8xf32>, vector<16x8xf32>, vector<16x8xf32>, vector<16x8xf32> -> vector<16x32xf32>
    %112 = arith.addf %32, %111 : vector<16x32xf32>
    %113 = arith.truncf %112 : vector<16x32xf32> to vector<16x32xbf16>
    %114 = vector.extract_strided_slice %25 {offsets = [0, 32], sizes = [32, 32], strides = [1, 1]} : vector<32x64xbf16> to vector<32x32xbf16>
    %cst_44 = arith.constant dense<0.000000e+00> : vector<16x32xf32>
    %115 = tpu.matmul %113, %114, %cst_44 {dimension_numbers = #tpu.dot_dimension_numbers<[1], [0], [0], [1], [0, 0, 1, 1], [], []>} : vector<16x32xbf16>, vector<32x32xbf16>, vector<16x32xf32> -> vector<16x32xf32>
    %cst_45 = arith.constant 0.000000e+00 : f32
    %116 = vector.broadcast %cst_45 : f32 to vector<16x32xf32>
    %117 = arith.maximumf %115, %116 : vector<16x32xf32>
    %118 = vector.broadcast %0 : vector<16x1xf32> to vector<16x32xf32>
    %119 = arith.mulf %117, %118 : vector<16x32xf32>
    %120 = arith.addf %112, %119 : vector<16x32xf32>
    %c1 = arith.constant 1 : index
    %c0_46 = arith.constant 0 : index
    %c0_47 = arith.constant 0 : index
    %121 = vector.load %arg10[%c1, %c0_46, %c0_47] : memref<2x32x64xbf16, #tpu.memory_space<vmem>>, vector<1x32x64xbf16>
    %122 = vector.shape_cast %121 : vector<1x32x64xbf16> to vector<32x64xbf16>
    %c1_48 = arith.constant 1 : index
    %c0_49 = arith.constant 0 : index
    %c0_50 = arith.constant 0 : index
    %123 = vector.load %arg11[%c1_48, %c0_49, %c0_50] : memref<2x64x64xbf16, #tpu.memory_space<vmem>>, vector<1x64x64xbf16>
    %124 = vector.shape_cast %123 : vector<1x64x64xbf16> to vector<64x64xbf16>
    %125 = vector.broadcast %0 : vector<16x1xf32> to vector<16x32xf32>
    %126 = arith.mulf %120, %125 : vector<16x32xf32>
    %127 = arith.truncf %126 : vector<16x32xf32> to vector<16x32xbf16>
    %128 = vector.extract_strided_slice %122 {offsets = [0, 0], sizes = [32, 32], strides = [1, 1]} : vector<32x64xbf16> to vector<32x32xbf16>
    %cst_51 = arith.constant dense<0.000000e+00> : vector<16x32xf32>
    %129 = tpu.matmul %127, %128, %cst_51 {dimension_numbers = #tpu.dot_dimension_numbers<[1], [0], [0], [1], [0, 0, 1, 1], [], []>} : vector<16x32xbf16>, vector<32x32xbf16>, vector<16x32xf32> -> vector<16x32xf32>
    %cst_52 = arith.constant dense<0.000000e+00> : vector<16x64xf32>
    %130 = tpu.matmul %23, %124, %cst_52 {dimension_numbers = #tpu.dot_dimension_numbers<[1], [0], [0], [1], [0, 0, 1, 1], [], []>} : vector<16x64xbf16>, vector<64x64xbf16>, vector<16x64xf32> -> vector<16x64xf32>
    %131 = arith.truncf %129 : vector<16x32xf32> to vector<16x32xbf16>
    %132 = vector.extract_strided_slice %130 {offsets = [0, 0], sizes = [16, 32], strides = [1, 1]} : vector<16x64xf32> to vector<16x32xf32>
    %133 = arith.truncf %132 : vector<16x32xf32> to vector<16x32xbf16>
    %134 = vector.extract_strided_slice %130 {offsets = [0, 32], sizes = [16, 32], strides = [1, 1]} : vector<16x64xf32> to vector<16x32xf32>
    %135 = arith.truncf %134 : vector<16x32xf32> to vector<16x32xbf16>
    %136 = vector.extract_strided_slice %131 {offsets = [0, 0], sizes = [16, 8], strides = [1, 1]} : vector<16x32xbf16> to vector<16x8xbf16>
    %137 = vector.extract_strided_slice %133 {offsets = [0, 0], sizes = [16, 8], strides = [1, 1]} : vector<16x32xbf16> to vector<16x8xbf16>
    %138 = vector.extract_strided_slice %135 {offsets = [0, 0], sizes = [16, 8], strides = [1, 1]} : vector<16x32xbf16> to vector<16x8xbf16>
    %cst_53 = arith.constant dense<0.000000e+00> : vector<16x16xf32>
    %139 = tpu.matmul %136, %137, %cst_53 {dimension_numbers = #tpu.dot_dimension_numbers<[1], [1], [0], [0], [0, 0, 1, 0], [], []>} : vector<16x8xbf16>, vector<16x8xbf16>, vector<16x16xf32> -> vector<16x16xf32>
    %140 = arith.addf %139, %5 : vector<16x16xf32>
    %cst_54 = arith.constant dense<0xFF800000> : vector<16xf32>
    %141 = vector.multi_reduction <maximumf>, %140, %cst_54 [1] : vector<16x16xf32> to vector<16xf32>
    %142 = vector.shape_cast %141 : vector<16xf32> to vector<16x1xf32>
    %143 = vector.broadcast %142 : vector<16x1xf32> to vector<16x16xf32>
    %144 = arith.subf %140, %143 : vector<16x16xf32>
    %145 = math.exp %144 : vector<16x16xf32>
    %cst_55 = arith.constant dense<0.000000e+00> : vector<16xf32>
    %146 = vector.multi_reduction <add>, %145, %cst_55 [1] : vector<16x16xf32> to vector<16xf32>
    %147 = vector.shape_cast %146 : vector<16xf32> to vector<16x1xf32>
    %148 = tpu.reciprocal %147 {approx = true} : vector<16x1xf32> -> vector<16x1xf32>
    %149 = vector.broadcast %148 : vector<16x1xf32> to vector<16x16xf32>
    %150 = arith.mulf %145, %149 : vector<16x16xf32>
    %151 = arith.mulf %150, %1 : vector<16x16xf32>
    %152 = arith.truncf %151 : vector<16x16xf32> to vector<16x16xbf16>
    %cst_56 = arith.constant dense<0.000000e+00> : vector<16x8xf32>
    %153 = tpu.matmul %152, %138, %cst_56 {dimension_numbers = #tpu.dot_dimension_numbers<[1], [0], [0], [1], [0, 0, 1, 1], [], []>} : vector<16x16xbf16>, vector<16x8xbf16>, vector<16x8xf32> -> vector<16x8xf32>
    %154 = vector.extract_strided_slice %131 {offsets = [0, 8], sizes = [16, 8], strides = [1, 1]} : vector<16x32xbf16> to vector<16x8xbf16>
    %155 = vector.extract_strided_slice %133 {offsets = [0, 8], sizes = [16, 8], strides = [1, 1]} : vector<16x32xbf16> to vector<16x8xbf16>
    %156 = vector.extract_strided_slice %135 {offsets = [0, 8], sizes = [16, 8], strides = [1, 1]} : vector<16x32xbf16> to vector<16x8xbf16>
    %cst_57 = arith.constant dense<0.000000e+00> : vector<16x16xf32>
    %157 = tpu.matmul %154, %155, %cst_57 {dimension_numbers = #tpu.dot_dimension_numbers<[1], [1], [0], [0], [0, 0, 1, 0], [], []>} : vector<16x8xbf16>, vector<16x8xbf16>, vector<16x16xf32> -> vector<16x16xf32>
    %158 = arith.addf %157, %5 : vector<16x16xf32>
    %cst_58 = arith.constant dense<0xFF800000> : vector<16xf32>
    %159 = vector.multi_reduction <maximumf>, %158, %cst_58 [1] : vector<16x16xf32> to vector<16xf32>
    %160 = vector.shape_cast %159 : vector<16xf32> to vector<16x1xf32>
    %161 = vector.broadcast %160 : vector<16x1xf32> to vector<16x16xf32>
    %162 = arith.subf %158, %161 : vector<16x16xf32>
    %163 = math.exp %162 : vector<16x16xf32>
    %cst_59 = arith.constant dense<0.000000e+00> : vector<16xf32>
    %164 = vector.multi_reduction <add>, %163, %cst_59 [1] : vector<16x16xf32> to vector<16xf32>
    %165 = vector.shape_cast %164 : vector<16xf32> to vector<16x1xf32>
    %166 = tpu.reciprocal %165 {approx = true} : vector<16x1xf32> -> vector<16x1xf32>
    %167 = vector.broadcast %166 : vector<16x1xf32> to vector<16x16xf32>
    %168 = arith.mulf %163, %167 : vector<16x16xf32>
    %169 = arith.mulf %168, %1 : vector<16x16xf32>
    %170 = arith.truncf %169 : vector<16x16xf32> to vector<16x16xbf16>
    %cst_60 = arith.constant dense<0.000000e+00> : vector<16x8xf32>
    %171 = tpu.matmul %170, %156, %cst_60 {dimension_numbers = #tpu.dot_dimension_numbers<[1], [0], [0], [1], [0, 0, 1, 1], [], []>} : vector<16x16xbf16>, vector<16x8xbf16>, vector<16x8xf32> -> vector<16x8xf32>
    %172 = vector.extract_strided_slice %131 {offsets = [0, 16], sizes = [16, 8], strides = [1, 1]} : vector<16x32xbf16> to vector<16x8xbf16>
    %173 = vector.extract_strided_slice %133 {offsets = [0, 16], sizes = [16, 8], strides = [1, 1]} : vector<16x32xbf16> to vector<16x8xbf16>
    %174 = vector.extract_strided_slice %135 {offsets = [0, 16], sizes = [16, 8], strides = [1, 1]} : vector<16x32xbf16> to vector<16x8xbf16>
    %cst_61 = arith.constant dense<0.000000e+00> : vector<16x16xf32>
    %175 = tpu.matmul %172, %173, %cst_61 {dimension_numbers = #tpu.dot_dimension_numbers<[1], [1], [0], [0], [0, 0, 1, 0], [], []>} : vector<16x8xbf16>, vector<16x8xbf16>, vector<16x16xf32> -> vector<16x16xf32>
    %176 = arith.addf %175, %5 : vector<16x16xf32>
    %cst_62 = arith.constant dense<0xFF800000> : vector<16xf32>
    %177 = vector.multi_reduction <maximumf>, %176, %cst_62 [1] : vector<16x16xf32> to vector<16xf32>
    %178 = vector.shape_cast %177 : vector<16xf32> to vector<16x1xf32>
    %179 = vector.broadcast %178 : vector<16x1xf32> to vector<16x16xf32>
    %180 = arith.subf %176, %179 : vector<16x16xf32>
    %181 = math.exp %180 : vector<16x16xf32>
    %cst_63 = arith.constant dense<0.000000e+00> : vector<16xf32>
    %182 = vector.multi_reduction <add>, %181, %cst_63 [1] : vector<16x16xf32> to vector<16xf32>
    %183 = vector.shape_cast %182 : vector<16xf32> to vector<16x1xf32>
    %184 = tpu.reciprocal %183 {approx = true} : vector<16x1xf32> -> vector<16x1xf32>
    %185 = vector.broadcast %184 : vector<16x1xf32> to vector<16x16xf32>
    %186 = arith.mulf %181, %185 : vector<16x16xf32>
    %187 = arith.mulf %186, %1 : vector<16x16xf32>
    %188 = arith.truncf %187 : vector<16x16xf32> to vector<16x16xbf16>
    %cst_64 = arith.constant dense<0.000000e+00> : vector<16x8xf32>
    %189 = tpu.matmul %188, %174, %cst_64 {dimension_numbers = #tpu.dot_dimension_numbers<[1], [0], [0], [1], [0, 0, 1, 1], [], []>} : vector<16x16xbf16>, vector<16x8xbf16>, vector<16x8xf32> -> vector<16x8xf32>
    %190 = vector.extract_strided_slice %131 {offsets = [0, 24], sizes = [16, 8], strides = [1, 1]} : vector<16x32xbf16> to vector<16x8xbf16>
    %191 = vector.extract_strided_slice %133 {offsets = [0, 24], sizes = [16, 8], strides = [1, 1]} : vector<16x32xbf16> to vector<16x8xbf16>
    %192 = vector.extract_strided_slice %135 {offsets = [0, 24], sizes = [16, 8], strides = [1, 1]} : vector<16x32xbf16> to vector<16x8xbf16>
    %cst_65 = arith.constant dense<0.000000e+00> : vector<16x16xf32>
    %193 = tpu.matmul %190, %191, %cst_65 {dimension_numbers = #tpu.dot_dimension_numbers<[1], [1], [0], [0], [0, 0, 1, 0], [], []>} : vector<16x8xbf16>, vector<16x8xbf16>, vector<16x16xf32> -> vector<16x16xf32>
    %194 = arith.addf %193, %5 : vector<16x16xf32>
    %cst_66 = arith.constant dense<0xFF800000> : vector<16xf32>
    %195 = vector.multi_reduction <maximumf>, %194, %cst_66 [1] : vector<16x16xf32> to vector<16xf32>
    %196 = vector.shape_cast %195 : vector<16xf32> to vector<16x1xf32>
    %197 = vector.broadcast %196 : vector<16x1xf32> to vector<16x16xf32>
    %198 = arith.subf %194, %197 : vector<16x16xf32>
    %199 = math.exp %198 : vector<16x16xf32>
    %cst_67 = arith.constant dense<0.000000e+00> : vector<16xf32>
    %200 = vector.multi_reduction <add>, %199, %cst_67 [1] : vector<16x16xf32> to vector<16xf32>
    %201 = vector.shape_cast %200 : vector<16xf32> to vector<16x1xf32>
    %202 = tpu.reciprocal %201 {approx = true} : vector<16x1xf32> -> vector<16x1xf32>
    %203 = vector.broadcast %202 : vector<16x1xf32> to vector<16x16xf32>
    %204 = arith.mulf %199, %203 : vector<16x16xf32>
    %205 = arith.mulf %204, %1 : vector<16x16xf32>
    %206 = arith.truncf %205 : vector<16x16xf32> to vector<16x16xbf16>
    %cst_68 = arith.constant dense<0.000000e+00> : vector<16x8xf32>
    %207 = tpu.matmul %206, %192, %cst_68 {dimension_numbers = #tpu.dot_dimension_numbers<[1], [0], [0], [1], [0, 0, 1, 1], [], []>} : vector<16x16xbf16>, vector<16x8xbf16>, vector<16x8xf32> -> vector<16x8xf32>
    %208 = tpu.concatenate %153, %171, %189, %207 in 1 : vector<16x8xf32>, vector<16x8xf32>, vector<16x8xf32>, vector<16x8xf32> -> vector<16x32xf32>
    %209 = arith.addf %129, %208 : vector<16x32xf32>
    %210 = arith.truncf %209 : vector<16x32xf32> to vector<16x32xbf16>
    %211 = vector.extract_strided_slice %122 {offsets = [0, 32], sizes = [32, 32], strides = [1, 1]} : vector<32x64xbf16> to vector<32x32xbf16>
    %cst_69 = arith.constant dense<0.000000e+00> : vector<16x32xf32>
    %212 = tpu.matmul %210, %211, %cst_69 {dimension_numbers = #tpu.dot_dimension_numbers<[1], [0], [0], [1], [0, 0, 1, 1], [], []>} : vector<16x32xbf16>, vector<32x32xbf16>, vector<16x32xf32> -> vector<16x32xf32>
    %cst_70 = arith.constant 0.000000e+00 : f32
    %213 = vector.broadcast %cst_70 : f32 to vector<16x32xf32>
    %214 = arith.maximumf %212, %213 : vector<16x32xf32>
    %215 = vector.broadcast %0 : vector<16x1xf32> to vector<16x32xf32>
    %216 = arith.mulf %214, %215 : vector<16x32xf32>
    %217 = arith.addf %209, %216 : vector<16x32xf32>
    %c0_71 = arith.constant 0 : index
    %c0_72 = arith.constant 0 : index
    %218 = vector.load %arg12[%c0_71, %c0_72] : memref<16x32xf32, #tpu.memory_space<vmem>>, vector<16x32xf32>
    tpu.vector_store %arg12[%c0_71, %c0_72], %217 {strides = array<i32>} : memref<16x32xf32, #tpu.memory_space<vmem>>, vector<16x32xf32>,
    return
  }
  func.func @transform_0(%arg0: i32) -> (i32, i32) {
    %c0_i32 = arith.constant 0 : i32
    %c0_i32_0 = arith.constant 0 : i32
    return %arg0, %c0_i32 : i32, i32
  }
  func.func @transform_1(%arg0: i32) -> (i32, i32) {
    %c0_i32 = arith.constant 0 : i32
    %c0_i32_0 = arith.constant 0 : i32
    return %arg0, %c0_i32 : i32, i32
  }
  func.func @transform_2(%arg0: i32) -> (i32, i32) {
    %c0_i32 = arith.constant 0 : i32
    %c0_i32_0 = arith.constant 0 : i32
    return %arg0, %c0_i32 : i32, i32
  }
  func.func @transform_3(%arg0: i32) -> (i32, i32) {
    %c0_i32 = arith.constant 0 : i32
    %c0_i32_0 = arith.constant 0 : i32
    return %arg0, %c0_i32 : i32, i32
  }
  func.func @transform_4(%arg0: i32) -> (i32, i32) {
    %c0_i32 = arith.constant 0 : i32
    %c0_i32_0 = arith.constant 0 : i32
    return %arg0, %c0_i32 : i32, i32
  }
  func.func @transform_5(%arg0: i32) -> (i32, i32) {
    %c0_i32 = arith.constant 0 : i32
    %c0_i32_0 = arith.constant 0 : i32
    %c0_i32_1 = arith.constant 0 : i32
    return %c0_i32, %c0_i32_0 : i32, i32
  }
  func.func @transform_6(%arg0: i32) -> (i32, i32) {
    %c0_i32 = arith.constant 0 : i32
    %c0_i32_0 = arith.constant 0 : i32
    %c0_i32_1 = arith.constant 0 : i32
    return %c0_i32, %c0_i32_0 : i32, i32
  }
  func.func @transform_7(%arg0: i32) -> (i32, i32) {
    %c0_i32 = arith.constant 0 : i32
    %c0_i32_0 = arith.constant 0 : i32
    %c0_i32_1 = arith.constant 0 : i32
    return %c0_i32, %c0_i32_0 : i32, i32
  }
  func.func @transform_8(%arg0: i32) -> (i32, i32) {
    %c0_i32 = arith.constant 0 : i32
    %c0_i32_0 = arith.constant 0 : i32
    %c0_i32_1 = arith.constant 0 : i32
    return %c0_i32, %c0_i32_0 : i32, i32
  }
  func.func @transform_9(%arg0: i32) -> (i32, i32, i32) {
    %c0_i32 = arith.constant 0 : i32
    %c0_i32_0 = arith.constant 0 : i32
    %c0_i32_1 = arith.constant 0 : i32
    %c0_i32_2 = arith.constant 0 : i32
    return %c0_i32, %c0_i32_0, %c0_i32_1 : i32, i32, i32
  }
  func.func @transform_10(%arg0: i32) -> (i32, i32, i32) {
    %c0_i32 = arith.constant 0 : i32
    %c0_i32_0 = arith.constant 0 : i32
    %c0_i32_1 = arith.constant 0 : i32
    %c0_i32_2 = arith.constant 0 : i32
    return %c0_i32, %c0_i32_0, %c0_i32_1 : i32, i32, i32
  }
  func.func @transform_11(%arg0: i32) -> (i32, i32) {
    %c0_i32 = arith.constant 0 : i32
    %c0_i32_0 = arith.constant 0 : i32
    return %arg0, %c0_i32 : i32, i32
  }
}

</mosaic_0001>

<llo_original>
// kernel: tpu_custom_call.1
$region0: #{tpu_custom_call.1}
  #allocation0 [shape = 'u32[]', space=smem, size = 0x4, offset = 0x4, fixed_abs, tag = 'smem constant byte address 0x4 - core index']
  #allocation1 [shape = 'u32[144,128]{1,0:T(1,128)}', space=vmem, size = 0x12000, scoped, tag = 'internal scratch']
  %s0 = inlined_call_operand.vmem [shape: f32[16,16], index: 0, kind: input, shape index: {}]
  %s1 = inlined_call_operand.hbm [shape: f32[16,32], index: 1, kind: input, shape index: {}]
  %s2 = inlined_call_operand.hbm [shape: f32[16,32], index: 2, kind: input, shape index: {}]
  %s3 = inlined_call_operand.vmem [shape: f32[16,1], index: 3, kind: input, shape index: {}]
  %s4 = inlined_call_operand.hbm [shape: f32[16,16], index: 4, kind: input, shape index: {}]
  %s5 = inlined_call_operand.hbm [shape: bf16[16,32], index: 5, kind: input, shape index: {}]
  %s6 = inlined_call_operand.vmem [shape: f32[1,32], index: 6, kind: input, shape index: {}]
  %s7 = inlined_call_operand.hbm [shape: bf16[32,32], index: 7, kind: input, shape index: {}]
  %s8 = inlined_call_operand.vmem [shape: f32[1,32], index: 8, kind: input, shape index: {}]
  %s9 = inlined_call_operand.vmem [shape: bf16[2,32,64], index: 9, kind: input, shape index: {}]
  %s10 = inlined_call_operand.hbm [shape: bf16[2,64,64], index: 10, kind: input, shape index: {}]
  %s11 = inlined_call_operand.hbm [shape: f32[16,32], index: 11, kind: output, shape index: {}]
  %s12 = sld [smem:[#allocation0]]
  $region78: #{tpu_custom_call.1} parent=0
    _
  %s14 = ssub.s32 1, %s12
  %s15 = scalar_select 0, %s14, %s12
  $region1: #{tpu_custom_call.1} parent=0
    #allocation2 [shape = 'u8[8192]{0}', space=vmem, size = 0x2000, scoped, tag = 'input window, operand 1, single buffered']
    #allocation3 [shape = 's32[1]{0}', space=sflag, size = 0x4, scoped, tag = 'scoped memory for tpu_custom_call.1']
    #allocation4 [shape = 's32[1]{0}', space=sflag, size = 0x4, scoped, tag = 'scoped memory for tpu_custom_call.1']
    #allocation5 [shape = 'u8[8192]{0}', space=vmem, size = 0x2000, scoped, tag = 'input window, operand 2, single buffered']
    #allocation6 [shape = 's32[1]{0}', space=sflag, size = 0x4, scoped, tag = 'scoped memory for tpu_custom_call.1']
    #allocation7 [shape = 'u8[8192]{0}', space=vmem, size = 0x2000, scoped, tag = 'input window, operand 4, single buffered']
    #allocation8 [shape = 'u8[4096]{0}', space=vmem, size = 0x1000, scoped, tag = 'input window, operand 5, single buffered']
    #allocation9 [shape = 's32[1]{0}', space=sflag, size = 0x4, scoped, tag = 'scoped memory for tpu_custom_call.1']
    #allocation10 [shape = 'u8[8192]{0}', space=vmem, size = 0x2000, scoped, tag = 'input window, operand 7, single buffered']
    #allocation11 [shape = 'u8[32768]{0}', space=vmem, size = 0x8000, scoped, tag = 'input window, operand 10, single buffered']
    #allocation12 [shape = 's32[1]{0}', space=sflag, size = 0x4, scoped, tag = 'scoped memory for tpu_custom_call.1']
    #allocation13 [shape = 'u8[8192]{0}', space=vmem, size = 0x2000, scoped, tag = 'output window, operand 0, single buffered']
    %16 = vsyncpa [#allocation3], 0
    %17 = vsyncpa [#allocation6], 0
    %18 = vsyncpa [#allocation9], 0
    %19 = vsyncpa [#allocation12], 0
    %20 = vsyncpa [#allocation4], 0
    // Predicated region
    $region2: #{tpu_custom_call.1} parent=1 // pred_check
      _
    $region3: #{tpu_custom_call.1} parent=1 // pred_check_branch
      %22 = sbr.rel (0) target = $region5
    $region4: #{tpu_custom_call.1} parent=1 // pred_region
      _
    $region5: #{tpu_custom_call.1} parent=1 // pred_fallthru
      _
    // Predicated region
    $region6: #{tpu_custom_call.1} parent=1 // pred_check
      _
    $region7: #{tpu_custom_call.1} parent=1 // pred_check_branch
      %24 = sbr.rel (0) target = $region9
    $region8: #{tpu_custom_call.1} parent=1 // pred_region
      %s26 = ssub.s32 256, 256
      %27 = vsyncadd [#allocation3], %s26
      %s28 = sshll.u32 [#allocation2], 4
      %s29 = int_to_ptr.vmem [resolvable:$true] %s28
      %34 = dma.hbm_to_vmem [thread:$0]  %s1, 256, %s29, [#allocation3], 128, 128, 8
    $region9: #{tpu_custom_call.1} parent=1 // pred_fallthru
      _
    // Predicated region
    $region10: #{tpu_custom_call.1} parent=1 // pred_check
      _
    $region11: #{tpu_custom_call.1} parent=1 // pred_check_branch
      %36 = sbr.rel (0) target = $region13
    $region12: #{tpu_custom_call.1} parent=1 // pred_region
      %s38 = ssub.s32 256, 256
      %39 = vsyncadd [#allocation6], %s38
      %s40 = sshll.u32 [#allocation5], 4
      %s41 = int_to_ptr.vmem [resolvable:$true] %s40
      %46 = dma.hbm_to_vmem [thread:$0]  %s2, 256, %s41, [#allocation6], 128, 128, 8
    $region13: #{tpu_custom_call.1} parent=1 // pred_fallthru
      _
    // Predicated region
    $region14: #{tpu_custom_call.1} parent=1 // pred_check
      _
    $region15: #{tpu_custom_call.1} parent=1 // pred_check_branch
      %48 = sbr.rel (0) target = $region17
    $region16: #{tpu_custom_call.1} parent=1 // pred_region
      _
    $region17: #{tpu_custom_call.1} parent=1 // pred_fallthru
      _
    // Predicated region
    $region18: #{tpu_custom_call.1} parent=1 // pred_check
      _
    $region19: #{tpu_custom_call.1} parent=1 // pred_check_branch
      %50 = sbr.rel (0) target = $region21
    $region20: #{tpu_custom_call.1} parent=1 // pred_region
      %s52 = ssub.s32 256, 256
      %53 = vsyncadd [#allocation6], %s52
      %s54 = sshll.u32 [#allocation7], 4
      %s55 = int_to_ptr.vmem [resolvable:$true] %s54
      %60 = dma.hbm_to_vmem [thread:$0]  %s4, 256, %s55, [#allocation6], 128, 128, 8
    $region21: #{tpu_custom_call.1} parent=1 // pred_fallthru
      _
    // Predicated region
    $region22: #{tpu_custom_call.1} parent=1 // pred_check
      _
    $region23: #{tpu_custom_call.1} parent=1 // pred_check_branch
      %62 = sbr.rel (0) target = $region25
    $region24: #{tpu_custom_call.1} parent=1 // pred_region
      %s64 = ssub.s32 128, 128
      %65 = vsyncadd [#allocation9], %s64
      %s66 = sshll.u32 [#allocation8], 4
      %s67 = int_to_ptr.vmem [resolvable:$true] %s66
      %72 = dma.hbm_to_vmem [thread:$0]  %s5, 128, %s67, [#allocation9], 64, 64, 4
    $region25: #{tpu_custom_call.1} parent=1 // pred_fallthru
      _
    // Predicated region
    $region26: #{tpu_custom_call.1} parent=1 // pred_check
      _
    $region27: #{tpu_custom_call.1} parent=1 // pred_check_branch
      %74 = sbr.rel (0) target = $region29
    $region28: #{tpu_custom_call.1} parent=1 // pred_region
      _
    $region29: #{tpu_custom_call.1} parent=1 // pred_fallthru
      _
    // Predicated region
    $region30: #{tpu_custom_call.1} parent=1 // pred_check
      _
    $region31: #{tpu_custom_call.1} parent=1 // pred_check_branch
      %76 = sbr.rel (0) target = $region33
    $region32: #{tpu_custom_call.1} parent=1 // pred_region
      %s78 = ssub.s32 256, 256
      %79 = vsyncadd [#allocation9], %s78
      %s80 = sshll.u32 [#allocation10], 4
      %s81 = int_to_ptr.vmem [resolvable:$true] %s80
      %86 = dma.hbm_to_vmem [thread:$0]  %s7, 256, %s81, [#allocation9], 64, 64, 4
    $region33: #{tpu_custom_call.1} parent=1 // pred_fallthru
      _
    // Predicated region
    $region34: #{tpu_custom_call.1} parent=1 // pred_check
      _
    $region35: #{tpu_custom_call.1} parent=1 // pred_check_branch
      %88 = sbr.rel (0) target = $region37
    $region36: #{tpu_custom_call.1} parent=1 // pred_region
      _
    $region37: #{tpu_custom_call.1} parent=1 // pred_fallthru
      _
    // Predicated region
    $region38: #{tpu_custom_call.1} parent=1 // pred_check
      _
    $region39: #{tpu_custom_call.1} parent=1 // pred_check_branch
      %90 = sbr.rel (0) target = $region41
    $region40: #{tpu_custom_call.1} parent=1 // pred_region
      _
    $region41: #{tpu_custom_call.1} parent=1 // pred_fallthru
      _
    // Predicated region
    $region42: #{tpu_custom_call.1} parent=1 // pred_check
      _
    $region43: #{tpu_custom_call.1} parent=1 // pred_check_branch
      %92 = sbr.rel (0) target = $region45
    $region44: #{tpu_custom_call.1} parent=1 // pred_region
      %s94 = ssub.s32 1024, 1024
      %95 = vsyncadd [#allocation12], %s94
      %s96 = sshll.u32 [#allocation11], 4
      %s97 = int_to_ptr.vmem [resolvable:$true] %s96
      %102 = dma.hbm_to_vmem [thread:$0]  %s10, 1024, %s97, [#allocation12], 64, 64, 4
    $region45: #{tpu_custom_call.1} parent=1 // pred_fallthru
      _
    // Predicated region
    $region46: #{tpu_custom_call.1} parent=1 // pred_check
      _
    $region47: #{tpu_custom_call.1} parent=1 // pred_check_branch
      %104 = sbr.rel (0) target = $region49
    $region48: #{tpu_custom_call.1} parent=1 // pred_region
      %105 = dma.done [#allocation3], 256
    $region49: #{tpu_custom_call.1} parent=1 // pred_fallthru
      _
    // Predicated region
    $region50: #{tpu_custom_call.1} parent=1 // pred_check
      _
    $region51: #{tpu_custom_call.1} parent=1 // pred_check_branch
      %107 = sbr.rel (0) target = $region53
    $region52: #{tpu_custom_call.1} parent=1 // pred_region
      %108 = dma.done [#allocation6], 256
    $region53: #{tpu_custom_call.1} parent=1 // pred_fallthru
      _
    // Predicated region
    $region54: #{tpu_custom_call.1} parent=1 // pred_check
      _
    $region55: #{tpu_custom_call.1} parent=1 // pred_check_branch
      %110 = sbr.rel (0) target = $region57
    $region56: #{tpu_custom_call.1} parent=1 // pred_region
      %111 = dma.done [#allocation6], 256
    $region57: #{tpu_custom_call.1} parent=1 // pred_fallthru
      _
    // Predicated region
    $region58: #{tpu_custom_call.1} parent=1 // pred_check
      _
    $region59: #{tpu_custom_call.1} parent=1 // pred_check_branch
      %113 = sbr.rel (0) target = $region61
    $region60: #{tpu_custom_call.1} parent=1 // pred_region
      %114 = dma.done [#allocation9], 128
    $region61: #{tpu_custom_call.1} parent=1 // pred_fallthru
      _
    // Predicated region
    $region62: #{tpu_custom_call.1} parent=1 // pred_check
      _
    $region63: #{tpu_custom_call.1} parent=1 // pred_check_branch
      %116 = sbr.rel (0) target = $region65
    $region64: #{tpu_custom_call.1} parent=1 // pred_region
      %117 = dma.done [#allocation9], 256
    $region65: #{tpu_custom_call.1} parent=1 // pred_fallthru
      _
    // Predicated region
    $region66: #{tpu_custom_call.1} parent=1 // pred_check
      _
    $region67: #{tpu_custom_call.1} parent=1 // pred_check_branch
      %119 = sbr.rel (0) target = $region69
    $region68: #{tpu_custom_call.1} parent=1 // pred_region
      %120 = dma.done [#allocation12], 1024
    $region69: #{tpu_custom_call.1} parent=1 // pred_fallthru
      _
    %v122 = vld [vmem:[%s3] sm:$0xff]
    %v123 = vld [vmem:[%s3 + $0x8] sm:$0xff]
    %v124 = vld [vmem:[#allocation7] sm:$0xff]
    %v125 = vld [vmem:[#allocation7 + $0x8] sm:$0xff]
    %v126 = vsub.f32 %v124, 1.0
    %v127 = vsub.f32 %v125, 1.0
    %v128 = vmul.f32 %v126, 1e+38
    %v129 = vmul.f32 %v127, 1e+38
    %v130 = vld [vmem:[%s0] sm:$0xff]
    %v131 = vld [vmem:[%s0 + $0x8] sm:$0xff]
    %v132 = vpack.c.bf16 %v131, %v130
    %v133 = vld [vmem:[#allocation8] sm:$0xf]
    %v134 = vld [vmem:[#allocation8 + $0x4] sm:$0xf]
    %v135 = vld [vmem:[%s6] sm:$0x1]
    %v137 = vlaneseq
    %v138 = vshrl.u32 %v137, 7
    %v139 = vsub.s32 0, %v138
    %v140 = vrot.slane %v135, %v139
    %v144 = vunpack.c.l.b16 %v133
    %v145 = vunpack.c.l.b16 %v134
    %v146 = vpack.c.b16 %v145, %v144
    %vm148 = vcmask 130048
    %v150 = vsel %vm148, %v132, 0
    %152 = vmatprep.subr.bf16.mxu0 0
    %153 = vmatpush1.bf16.msra.mxu0 %v146
    %154 = vmatprep.subr.bf16.mxu0 0
    %155 = vmatpush1.bf16.msra.mxu0 0
    %156 = vmatprep.subr.bf16.mxu0 0
    %157 = vmatpush1.bf16.msra.mxu0 0
    %158 = vmatprep.subr.bf16.mxu0 0
    %159 = vmatpush1.bf16.msra.mxu0 0
    %160 = vmatprep.subr.bf16.mxu0 0
    %161 = vmatpush1.bf16.msra.mxu0 0
    %162 = vmatprep.subr.bf16.mxu0 0
    %163 = vmatpush1.bf16.msra.mxu0 0
    %164 = vmatprep.subr.bf16.mxu0 0
    %165 = vmatpush1.bf16.msra.mxu0 0
    %166 = vmatprep.subr.bf16.mxu0 0
    %167 = vmatpush1.bf16.msra.mxu0 0
    %168 = vmatprep.subr.bf16.mxu0 0
    %169 = vmatpush1.bf16.msra.mxu0 0
    %170 = vmatprep.subr.bf16.mxu0 0
    %171 = vmatpush1.bf16.msra.mxu0 0
    %172 = vmatprep.subr.bf16.mxu0 0
    %173 = vmatpush1.bf16.msra.mxu0 0
    %174 = vmatprep.subr.bf16.mxu0 0
    %175 = vmatpush1.bf16.msra.mxu0 0
    %176 = vmatprep.subr.bf16.mxu0 0
    %177 = vmatpush1.bf16.msra.mxu0 0
    %178 = vmatprep.subr.bf16.mxu0 0
    %179 = vmatpush1.bf16.msra.mxu0 0
    %180 = vmatprep.subr.bf16.mxu0 0
    %181 = vmatpush1.bf16.msra.mxu0 0
    %182 = vmatprep.subr.bf16.mxu0 0
    %183 = vmatpush1.bf16.msra.mxu0 0
    %184 = vmatprep.mubr.bf16.mxu0 0
    %185 = vmatmul.mubr.bf16.gmra.mrb[0].mxu0 %v150
    %v186 = vpop.f32.mrb[0].mxu0
    %v187 = vadd.f32 %v140, %v186
    %v188 = vpop.f32.mrb[0].mxu0
    %v189 = vpop.f32.mrb[0].mxu0
    %v190 = vadd.f32 %v140, %v189
    %v191 = vpop.f32.mrb[0].mxu0
    %192 = vdwg.mxu0
    %v193 = vld [vmem:[#allocation2] sm:$0xff]
    %v194 = vld [vmem:[#allocation2 + $0x8] sm:$0xff]
    %v195 = vpack.c.bf16 %v194, %v193
    %v196 = vld [vmem:[#allocation10] sm:$0xf]
    %v197 = vld [vmem:[#allocation10 + $0x4] sm:$0xf]
    %v198 = vld [vmem:[#allocation10 + $0x8] sm:$0xf]
    %v199 = vld [vmem:[#allocation10 + $0xc] sm:$0xf]
    %v200 = vld [vmem:[%s8] sm:$0x1]
    %v202 = vlaneseq
    %v203 = vshrl.u32 %v202, 7
    %v204 = vsub.s32 0, %v203
    %v205 = vrot.slane %v200, %v204
    %v211 = vunpack.c.l.b16 %v196
    %v212 = vunpack.c.l.b16 %v197
    %v213 = vunpack.c.l.b16 %v198
    %v214 = vunpack.c.l.b16 %v199
    %v215 = vpack.c.b16 %v212, %v211
    %v216 = vpack.c.b16 %v214, %v213
    %vm219 = vcmask 261120
    %v221 = vsel %vm219, %v195, 0
    %223 = vmatprep.subr.bf16.mxu0 0
    %224 = vmatpush1.bf16.msra.mxu0 %v215
    %225 = vmatprep.subr.bf16.mxu0 0
    %226 = vmatpush1.bf16.msra.mxu0 %v216
    %227 = vmatprep.subr.bf16.mxu0 0
    %228 = vmatpush1.bf16.msra.mxu0 0
    %229 = vmatprep.subr.bf16.mxu0 0
    %230 = vmatpush1.bf16.msra.mxu0 0
    %231 = vmatprep.subr.bf16.mxu0 0
    %232 = vmatpush1.bf16.msra.mxu0 0
    %233 = vmatprep.subr.bf16.mxu0 0
    %234 = vmatpush1.bf16.msra.mxu0 0
    %235 = vmatprep.subr.bf16.mxu0 0
    %236 = vmatpush1.bf16.msra.mxu0 0
    %237 = vmatprep.subr.bf16.mxu0 0
    %238 = vmatpush1.bf16.msra.mxu0 0
    %239 = vmatprep.subr.bf16.mxu0 0
    %240 = vmatpush1.bf16.msra.mxu0 0
    %241 = vmatprep.subr.bf16.mxu0 0
    %242 = vmatpush1.bf16.msra.mxu0 0
    %243 = vmatprep.subr.bf16.mxu0 0
    %244 = vmatpush1.bf16.msra.mxu0 0
    %245 = vmatprep.subr.bf16.mxu0 0
    %246 = vmatpush1.bf16.msra.mxu0 0
    %247 = vmatprep.subr.bf16.mxu0 0
    %248 = vmatpush1.bf16.msra.mxu0 0
    %249 = vmatprep.subr.bf16.mxu0 0
    %250 = vmatpush1.bf16.msra.mxu0 0
    %251 = vmatprep.subr.bf16.mxu0 0
    %252 = vmatpush1.bf16.msra.mxu0 0
    %253 = vmatprep.subr.bf16.mxu0 0
    %254 = vmatpush1.bf16.msra.mxu0 0
    %255 = vmatprep.mubr.bf16.mxu0 0
    %256 = vmatmul.mubr.bf16.gmra.mrb[0].mxu0 %v221
    %v257 = vpop.f32.mrb[0].mxu0
    %v258 = vadd.f32 %v205, %v257
    %v259 = vpop.f32.mrb[0].mxu0
    %v260 = vpop.f32.mrb[0].mxu0
    %v261 = vadd.f32 %v205, %v260
    %v262 = vpop.f32.mrb[0].mxu0
    %263 = vdwg.mxu0
    %v264 = vpack.c.bf16 %v261, %v258
    %v265 = vld [vmem:[#allocation5] sm:$0xff]
    %v266 = vld [vmem:[#allocation5 + $0x8] sm:$0xff]
    %v267 = vpack.c.bf16 %v266, %v265
    %269 = vrot.lane.b32.xlu0 %v267, 32
    %v270 = vpop.permute.xlu0 %269
    %v273 = vsel %vm219, %v264, %v270
    %v274 = vld [vmem:[%s9] sm:$0xf]
    %v275 = vld [vmem:[%s9 + $0x4] sm:$0xf]
    %v276 = vld [vmem:[%s9 + $0x8] sm:$0xf]
    %v277 = vld [vmem:[%s9 + $0xc] sm:$0xf]
    %v278 = vld [vmem:[#allocation11] sm:$0xf]
    %v279 = vld [vmem:[#allocation11 + $0x4] sm:$0xf]
    %v280 = vld [vmem:[#allocation11 + $0x8] sm:$0xf]
    %v281 = vld [vmem:[#allocation11 + $0xc] sm:$0xf]
    %v282 = vld [vmem:[#allocation11 + $0x10] sm:$0xf]
    %v283 = vld [vmem:[#allocation11 + $0x14] sm:$0xf]
    %v284 = vld [vmem:[#allocation11 + $0x18] sm:$0xf]
    %v285 = vld [vmem:[#allocation11 + $0x1c] sm:$0xf]
    %287 = vset.pattern.permute.xlu0 0
    %288 = vperm.xlu0 %287, %v122
    %v289 = vpop.permute.xlu0 %288
    %292 = vset.pattern.permute.xlu0 0
    %293 = vperm.xlu0 %292, %v123
    %v294 = vpop.permute.xlu0 %293
    %v296 = vmul.f32 %v187, %v289
    %v297 = vmul.f32 %v190, %v294
    %v298 = vpack.c.bf16 %v297, %v296
    %v303 = vunpack.c.l.b16 %v274
    %v304 = vunpack.c.l.b16 %v275
    %v305 = vunpack.c.l.b16 %v276
    %v306 = vunpack.c.l.b16 %v277
    %v307 = vpack.c.b16 %v304, %v303
    %v308 = vpack.c.b16 %v306, %v305
    %v312 = vsel %vm219, %v298, 0
    %314 = vmatprep.subr.bf16.mxu0 0
    %315 = vmatpush1.bf16.msra.mxu0 %v307
    %316 = vmatprep.subr.bf16.mxu0 0
    %317 = vmatpush1.bf16.msra.mxu0 %v308
    %318 = vmatprep.subr.bf16.mxu0 0
    %319 = vmatpush1.bf16.msra.mxu0 0
    %320 = vmatprep.subr.bf16.mxu0 0
    %321 = vmatpush1.bf16.msra.mxu0 0
    %322 = vmatprep.subr.bf16.mxu0 0
    %323 = vmatpush1.bf16.msra.mxu0 0
    %324 = vmatprep.subr.bf16.mxu0 0
    %325 = vmatpush1.bf16.msra.mxu0 0
    %326 = vmatprep.subr.bf16.mxu0 0
    %327 = vmatpush1.bf16.msra.mxu0 0
    %328 = vmatprep.subr.bf16.mxu0 0
    %329 = vmatpush1.bf16.msra.mxu0 0
    %330 = vmatprep.subr.bf16.mxu0 0
    %331 = vmatpush1.bf16.msra.mxu0 0
    %332 = vmatprep.subr.bf16.mxu0 0
    %333 = vmatpush1.bf16.msra.mxu0 0
    %334 = vmatprep.subr.bf16.mxu0 0
    %335 = vmatpush1.bf16.msra.mxu0 0
    %336 = vmatprep.subr.bf16.mxu0 0
    %337 = vmatpush1.bf16.msra.mxu0 0
    %338 = vmatprep.subr.bf16.mxu0 0
    %339 = vmatpush1.bf16.msra.mxu0 0
    %340 = vmatprep.subr.bf16.mxu0 0
    %341 = vmatpush1.bf16.msra.mxu0 0
    %342 = vmatprep.subr.bf16.mxu0 0
    %343 = vmatpush1.bf16.msra.mxu0 0
    %344 = vmatprep.subr.bf16.mxu0 0
    %345 = vmatpush1.bf16.msra.mxu0 0
    %346 = vmatprep.mubr.bf16.mxu0 0
    %347 = vmatmul.mubr.bf16.gmra.mrb[0].mxu0 %v312
    %v348 = vpop.f32.mrb[0].mxu0
    %v349 = vadd.f32 0.0, %v348
    %v350 = vpop.f32.mrb[0].mxu0
    %v351 = vpop.f32.mrb[0].mxu0
    %v352 = vadd.f32 0.0, %v351
    %v353 = vpop.f32.mrb[0].mxu0
    %354 = vdwg.mxu0
    %v363 = vunpack.c.l.b16 %v278
    %v364 = vunpack.c.l.b16 %v279
    %v365 = vunpack.c.l.b16 %v280
    %v366 = vunpack.c.l.b16 %v281
    %v367 = vunpack.c.l.b16 %v282
    %v368 = vunpack.c.l.b16 %v283
    %v369 = vunpack.c.l.b16 %v284
    %v370 = vunpack.c.l.b16 %v285
    %v371 = vpack.c.b16 %v364, %v363
    %v372 = vpack.c.b16 %v366, %v365
    %v373 = vpack.c.b16 %v368, %v367
    %v374 = vpack.c.b16 %v370, %v369
    %vm379 = vcmask 523264
    %v380 = vsel %vm379, %v273, 0
    %382 = vmatprep.subr.bf16.mxu0 0
    %383 = vmatpush1.bf16.msra.mxu0 %v371
    %384 = vmatprep.subr.bf16.mxu0 0
    %385 = vmatpush1.bf16.msra.mxu0 %v372
    %386 = vmatprep.subr.bf16.mxu0 0
    %387 = vmatpush1.bf16.msra.mxu0 %v373
    %388 = vmatprep.subr.bf16.mxu0 0
    %389 = vmatpush1.bf16.msra.mxu0 %v374
    %390 = vmatprep.subr.bf16.mxu0 0
    %391 = vmatpush1.bf16.msra.mxu0 0
    %392 = vmatprep.subr.bf16.mxu0 0
    %393 = vmatpush1.bf16.msra.mxu0 0
    %394 = vmatprep.subr.bf16.mxu0 0
    %395 = vmatpush1.bf16.msra.mxu0 0
    %396 = vmatprep.subr.bf16.mxu0 0
    %397 = vmatpush1.bf16.msra.mxu0 0
    %398 = vmatprep.subr.bf16.mxu0 0
    %399 = vmatpush1.bf16.msra.mxu0 0
    %400 = vmatprep.subr.bf16.mxu0 0
    %401 = vmatpush1.bf16.msra.mxu0 0
    %402 = vmatprep.subr.bf16.mxu0 0
    %403 = vmatpush1.bf16.msra.mxu0 0
    %404 = vmatprep.subr.bf16.mxu0 0
    %405 = vmatpush1.bf16.msra.mxu0 0
    %406 = vmatprep.subr.bf16.mxu0 0
    %407 = vmatpush1.bf16.msra.mxu0 0
    %408 = vmatprep.subr.bf16.mxu0 0
    %409 = vmatpush1.bf16.msra.mxu0 0
    %410 = vmatprep.subr.bf16.mxu0 0
    %411 = vmatpush1.bf16.msra.mxu0 0
    %412 = vmatprep.subr.bf16.mxu0 0
    %413 = vmatpush1.bf16.msra.mxu0 0
    %414 = vmatprep.mubr.bf16.mxu0 0
    %415 = vmatmul.mubr.bf16.gmra.mrb[0].mxu0 %v380
    %v416 = vpop.f32.mrb[0].mxu0
    %v417 = vadd.f32 0.0, %v416
    %v418 = vpop.f32.mrb[0].mxu0
    %v419 = vpop.f32.mrb[0].mxu0
    %v420 = vadd.f32 0.0, %v419
    %v421 = vpop.f32.mrb[0].mxu0
    %422 = vdwg.mxu0
    %v423 = vpack.c.bf16 %v352, %v349
    %v424 = vpack.c.bf16 %v420, %v417
    %vm425 = vcmask 64512
    %v427 = vsel %vm425, %v423, 0
    %v430 = vsel %vm425, %v424, 0
    %432 = vmatprep.subr.bf16.mxu0 0
    %433 = vmatpush1.bf16.xpose.msra.mxu0 %v430
    %434 = vmatprep.subr.bf16.mxu0 0
    %435 = vmatpush1.bf16.xpose.msra.mxu0 0
    %436 = vmatprep.subr.bf16.mxu0 0
    %437 = vmatpush1.bf16.xpose.msra.mxu0 0
    %438 = vmatprep.subr.bf16.mxu0 0
    %439 = vmatpush1.bf16.xpose.msra.mxu0 0
    %440 = vmatprep.subr.bf16.mxu0 0
    %441 = vmatpush1.bf16.xpose.msra.mxu0 0
    %442 = vmatprep.subr.bf16.mxu0 0
    %443 = vmatpush1.bf16.xpose.msra.mxu0 0
    %444 = vmatprep.subr.bf16.mxu0 0
    %445 = vmatpush1.bf16.xpose.msra.mxu0 0
    %446 = vmatprep.subr.bf16.mxu0 0
    %447 = vmatpush1.bf16.xpose.msra.mxu0 0
    %448 = vmatprep.subr.bf16.mxu0 0
    %449 = vmatpush1.bf16.xpose.msra.mxu0 0
    %450 = vmatprep.subr.bf16.mxu0 0
    %451 = vmatpush1.bf16.xpose.msra.mxu0 0
    %452 = vmatprep.subr.bf16.mxu0 0
    %453 = vmatpush1.bf16.xpose.msra.mxu0 0
    %454 = vmatprep.subr.bf16.mxu0 0
    %455 = vmatpush1.bf16.xpose.msra.mxu0 0
    %456 = vmatprep.subr.bf16.mxu0 0
    %457 = vmatpush1.bf16.xpose.msra.mxu0 0
    %458 = vmatprep.subr.bf16.mxu0 0
    %459 = vmatpush1.bf16.xpose.msra.mxu0 0
    %460 = vmatprep.subr.bf16.mxu0 0
    %461 = vmatpush1.bf16.xpose.msra.mxu0 0
    %462 = vmatprep.subr.bf16.mxu0 0
    %463 = vmatpush1.bf16.xpose.msra.mxu0 0
    %464 = vmatprep.mubr.bf16.mxu0 0
    %465 = vmatmul.mubr.bf16.gmra.mrb[0].mxu0 %v427
    %v466 = vpop.f32.mrb[0].mxu0
    %v467 = vadd.f32 %v128, %v466
    %v468 = vpop.f32.mrb[0].mxu0
    %v469 = vpop.f32.mrb[0].mxu0
    %v470 = vadd.f32 %v129, %v469
    %v471 = vpop.f32.mrb[0].mxu0
    %472 = vdwg.mxu0
    %v473 = vsel %vm148, %v467, -inf
    %474 = vmax.xlane.f32.xlu0 %v473
    %v475 = vpop.xlane.xlu0 %474
    %v476 = vsel %vm148, %v470, -inf
    %477 = vmax.xlane.f32.xlu0 %v476
    %v478 = vpop.xlane.xlu0 %477
    %v479 = vsub.f32 %v467, %v475
    %v480 = vsub.f32 %v470, %v478
    %v481 = vmul.f32 %v479, 1.442695
    %v482 = vpow.pop %v481
    %v483 = vmul.f32 %v480, 1.442695
    %v484 = vpow.pop %v483
    %v485 = vsel %vm148, %v482, 0.0
    %486 = vadd.xlane.f32.xlu0 %v485
    %v487 = vpop.xlane.xlu0 %486
    %v488 = vsel %vm148, %v484, 0.0
    %489 = vadd.xlane.f32.xlu0 %v488
    %v490 = vpop.xlane.xlu0 %489
    %v491 = vrcp.pop %v487
    %v492 = vrcp.pop %v490
    %v493 = vmul.f32 %v482, %v491
    %v494 = vmul.f32 %v484, %v492
    %v495 = vmul.f32 %v493, %v124
    %v496 = vmul.f32 %v494, %v125
    %v497 = vpack.c.bf16 %v496, %v495
    %499 = vrot.lane.b32.xlu0 %v424, 96
    %v500 = vpop.permute.xlu0 %499
    %v503 = vsel %vm148, %v497, 0
    %505 = vmatprep.subr.bf16.mxu0 0
    %506 = vmatpush1.bf16.msra.mxu0 %v500
    %507 = vmatprep.subr.bf16.mxu0 0
    %508 = vmatpush1.bf16.msra.mxu0 0
    %509 = vmatprep.subr.bf16.mxu0 0
    %510 = vmatpush1.bf16.msra.mxu0 0
    %511 = vmatprep.subr.bf16.mxu0 0
    %512 = vmatpush1.bf16.msra.mxu0 0
    %513 = vmatprep.subr.bf16.mxu0 0
    %514 = vmatpush1.bf16.msra.mxu0 0
    %515 = vmatprep.subr.bf16.mxu0 0
    %516 = vmatpush1.bf16.msra.mxu0 0
    %517 = vmatprep.subr.bf16.mxu0 0
    %518 = vmatpush1.bf16.msra.mxu0 0
    %519 = vmatprep.subr.bf16.mxu0 0
    %520 = vmatpush1.bf16.msra.mxu0 0
    %521 = vmatprep.subr.bf16.mxu0 0
    %522 = vmatpush1.bf16.msra.mxu0 0
    %523 = vmatprep.subr.bf16.mxu0 0
    %524 = vmatpush1.bf16.msra.mxu0 0
    %525 = vmatprep.subr.bf16.mxu0 0
    %526 = vmatpush1.bf16.msra.mxu0 0
    %527 = vmatprep.subr.bf16.mxu0 0
    %528 = vmatpush1.bf16.msra.mxu0 0
    %529 = vmatprep.subr.bf16.mxu0 0
    %530 = vmatpush1.bf16.msra.mxu0 0
    %531 = vmatprep.subr.bf16.mxu0 0
    %532 = vmatpush1.bf16.msra.mxu0 0
    %533 = vmatprep.subr.bf16.mxu0 0
    %534 = vmatpush1.bf16.msra.mxu0 0
    %535 = vmatprep.subr.bf16.mxu0 0
    %536 = vmatpush1.bf16.msra.mxu0 0
    %537 = vmatprep.mubr.bf16.mxu0 0
    %538 = vmatmul.mubr.bf16.gmra.mrb[0].mxu0 %v503
    %v539 = vpop.f32.mrb[0].mxu0
    %v540 = vadd.f32 0.0, %v539
    %v541 = vpop.f32.mrb[0].mxu0
    %v542 = vpop.f32.mrb[0].mxu0
    %v543 = vadd.f32 0.0, %v542
    %v544 = vpop.f32.mrb[0].mxu0
    %545 = vdwg.mxu0
    %547 = vrot.lane.b32.xlu0 %v423, 120
    %v548 = vpop.permute.xlu0 %547
    %549 = vrot.lane.b32.xlu0 %v424, 120
    %v550 = vpop.permute.xlu0 %549
    %v552 = vsel %vm425, %v548, 0
    %v555 = vsel %vm425, %v550, 0
    %557 = vmatprep.subr.bf16.mxu0 0
    %558 = vmatpush1.bf16.xpose.msra.mxu0 %v555
    %559 = vmatprep.subr.bf16.mxu0 0
    %560 = vmatpush1.bf16.xpose.msra.mxu0 0
    %561 = vmatprep.subr.bf16.mxu0 0
    %562 = vmatpush1.bf16.xpose.msra.mxu0 0
    %563 = vmatprep.subr.bf16.mxu0 0
    %564 = vmatpush1.bf16.xpose.msra.mxu0 0
    %565 = vmatprep.subr.bf16.mxu0 0
    %566 = vmatpush1.bf16.xpose.msra.mxu0 0
    %567 = vmatprep.subr.bf16.mxu0 0
    %568 = vmatpush1.bf16.xpose.msra.mxu0 0
    %569 = vmatprep.subr.bf16.mxu0 0
    %570 = vmatpush1.bf16.xpose.msra.mxu0 0
    %571 = vmatprep.subr.bf16.mxu0 0
    %572 = vmatpush1.bf16.xpose.msra.mxu0 0
    %573 = vmatprep.subr.bf16.mxu0 0
    %574 = vmatpush1.bf16.xpose.msra.mxu0 0
    %575 = vmatprep.subr.bf16.mxu0 0
    %576 = vmatpush1.bf16.xpose.msra.mxu0 0
    %577 = vmatprep.subr.bf16.mxu0 0
    %578 = vmatpush1.bf16.xpose.msra.mxu0 0
    %579 = vmatprep.subr.bf16.mxu0 0
    %580 = vmatpush1.bf16.xpose.msra.mxu0 0
    %581 = vmatprep.subr.bf16.mxu0 0
    %582 = vmatpush1.bf16.xpose.msra.mxu0 0
    %583 = vmatprep.subr.bf16.mxu0 0
    %584 = vmatpush1.bf16.xpose.msra.mxu0 0
    %585 = vmatprep.subr.bf16.mxu0 0
    %586 = vmatpush1.bf16.xpose.msra.mxu0 0
    %587 = vmatprep.subr.bf16.mxu0 0
    %588 = vmatpush1.bf16.xpose.msra.mxu0 0
    %589 = vmatprep.mubr.bf16.mxu0 0
    %590 = vmatmul.mubr.bf16.gmra.mrb[0].mxu0 %v552
    %v591 = vpop.f32.mrb[0].mxu0
    %v592 = vadd.f32 %v128, %v591
    %v593 = vpop.f32.mrb[0].mxu0
    %v594 = vpop.f32.mrb[0].mxu0
    %v595 = vadd.f32 %v129, %v594
    %v596 = vpop.f32.mrb[0].mxu0
    %597 = vdwg.mxu0
    %v598 = vsel %vm148, %v592, -inf
    %599 = vmax.xlane.f32.xlu0 %v598
    %v600 = vpop.xlane.xlu0 %599
    %v601 = vsel %vm148, %v595, -inf
    %602 = vmax.xlane.f32.xlu0 %v601
    %v603 = vpop.xlane.xlu0 %602
    %v604 = vsub.f32 %v592, %v600
    %v605 = vsub.f32 %v595, %v603
    %v606 = vmul.f32 %v604, 1.442695
    %v607 = vpow.pop %v606
    %v608 = vmul.f32 %v605, 1.442695
    %v609 = vpow.pop %v608
    %v610 = vsel %vm148, %v607, 0.0
    %611 = vadd.xlane.f32.xlu0 %v610
    %v612 = vpop.xlane.xlu0 %611
    %v613 = vsel %vm148, %v609, 0.0
    %614 = vadd.xlane.f32.xlu0 %v613
    %v615 = vpop.xlane.xlu0 %614
    %v616 = vrcp.pop %v612
    %v617 = vrcp.pop %v615
    %v618 = vmul.f32 %v607, %v616
    %v619 = vmul.f32 %v609, %v617
    %v620 = vmul.f32 %v618, %v124
    %v621 = vmul.f32 %v619, %v125
    %v622 = vpack.c.bf16 %v621, %v620
    %623 = vrot.lane.b32.xlu0 %v424, 88
    %v624 = vpop.permute.xlu0 %623
    %v627 = vsel %vm148, %v622, 0
    %629 = vmatprep.subr.bf16.mxu0 0
    %630 = vmatpush1.bf16.msra.mxu0 %v624
    %631 = vmatprep.subr.bf16.mxu0 0
    %632 = vmatpush1.bf16.msra.mxu0 0
    %633 = vmatprep.subr.bf16.mxu0 0
    %634 = vmatpush1.bf16.msra.mxu0 0
    %635 = vmatprep.subr.bf16.mxu0 0
    %636 = vmatpush1.bf16.msra.mxu0 0
    %637 = vmatprep.subr.bf16.mxu0 0
    %638 = vmatpush1.bf16.msra.mxu0 0
    %639 = vmatprep.subr.bf16.mxu0 0
    %640 = vmatpush1.bf16.msra.mxu0 0
    %641 = vmatprep.subr.bf16.mxu0 0
    %642 = vmatpush1.bf16.msra.mxu0 0
    %643 = vmatprep.subr.bf16.mxu0 0
    %644 = vmatpush1.bf16.msra.mxu0 0
    %645 = vmatprep.subr.bf16.mxu0 0
    %646 = vmatpush1.bf16.msra.mxu0 0
    %647 = vmatprep.subr.bf16.mxu0 0
    %648 = vmatpush1.bf16.msra.mxu0 0
    %649 = vmatprep.subr.bf16.mxu0 0
    %650 = vmatpush1.bf16.msra.mxu0 0
    %651 = vmatprep.subr.bf16.mxu0 0
    %652 = vmatpush1.bf16.msra.mxu0 0
    %653 = vmatprep.subr.bf16.mxu0 0
    %654 = vmatpush1.bf16.msra.mxu0 0
    %655 = vmatprep.subr.bf16.mxu0 0
    %656 = vmatpush1.bf16.msra.mxu0 0
    %657 = vmatprep.subr.bf16.mxu0 0
    %658 = vmatpush1.bf16.msra.mxu0 0
    %659 = vmatprep.subr.bf16.mxu0 0
    %660 = vmatpush1.bf16.msra.mxu0 0
    %661 = vmatprep.mubr.bf16.mxu0 0
    %662 = vmatmul.mubr.bf16.gmra.mrb[0].mxu0 %v627
    %v663 = vpop.f32.mrb[0].mxu0
    %v664 = vadd.f32 0.0, %v663
    %v665 = vpop.f32.mrb[0].mxu0
    %v666 = vpop.f32.mrb[0].mxu0
    %v667 = vadd.f32 0.0, %v666
    %v668 = vpop.f32.mrb[0].mxu0
    %669 = vdwg.mxu0
    %670 = vrot.lane.b32.xlu0 %v423, 112
    %v671 = vpop.permute.xlu0 %670
    %672 = vrot.lane.b32.xlu0 %v424, 112
    %v673 = vpop.permute.xlu0 %672
    %v675 = vsel %vm425, %v671, 0
    %v678 = vsel %vm425, %v673, 0
    %680 = vmatprep.subr.bf16.mxu0 0
    %681 = vmatpush1.bf16.xpose.msra.mxu0 %v678
    %682 = vmatprep.subr.bf16.mxu0 0
    %683 = vmatpush1.bf16.xpose.msra.mxu0 0
    %684 = vmatprep.subr.bf16.mxu0 0
    %685 = vmatpush1.bf16.xpose.msra.mxu0 0
    %686 = vmatprep.subr.bf16.mxu0 0
    %687 = vmatpush1.bf16.xpose.msra.mxu0 0
    %688 = vmatprep.subr.bf16.mxu0 0
    %689 = vmatpush1.bf16.xpose.msra.mxu0 0
    %690 = vmatprep.subr.bf16.mxu0 0
    %691 = vmatpush1.bf16.xpose.msra.mxu0 0
    %692 = vmatprep.subr.bf16.mxu0 0
    %693 = vmatpush1.bf16.xpose.msra.mxu0 0
    %694 = vmatprep.subr.bf16.mxu0 0
    %695 = vmatpush1.bf16.xpose.msra.mxu0 0
    %696 = vmatprep.subr.bf16.mxu0 0
    %697 = vmatpush1.bf16.xpose.msra.mxu0 0
    %698 = vmatprep.subr.bf16.mxu0 0
    %699 = vmatpush1.bf16.xpose.msra.mxu0 0
    %700 = vmatprep.subr.bf16.mxu0 0
    %701 = vmatpush1.bf16.xpose.msra.mxu0 0
    %702 = vmatprep.subr.bf16.mxu0 0
    %703 = vmatpush1.bf16.xpose.msra.mxu0 0
    %704 = vmatprep.subr.bf16.mxu0 0
    %705 = vmatpush1.bf16.xpose.msra.mxu0 0
    %706 = vmatprep.subr.bf16.mxu0 0
    %707 = vmatpush1.bf16.xpose.msra.mxu0 0
    %708 = vmatprep.subr.bf16.mxu0 0
    %709 = vmatpush1.bf16.xpose.msra.mxu0 0
    %710 = vmatprep.subr.bf16.mxu0 0
    %711 = vmatpush1.bf16.xpose.msra.mxu0 0
    %712 = vmatprep.mubr.bf16.mxu0 0
    %713 = vmatmul.mubr.bf16.gmra.mrb[0].mxu0 %v675
    %v714 = vpop.f32.mrb[0].mxu0
    %v715 = vadd.f32 %v128, %v714
    %v716 = vpop.f32.mrb[0].mxu0
    %v717 = vpop.f32.mrb[0].mxu0
    %v718 = vadd.f32 %v129, %v717
    %v719 = vpop.f32.mrb[0].mxu0
    %720 = vdwg.mxu0
    %v721 = vsel %vm148, %v715, -inf
    %722 = vmax.xlane.f32.xlu0 %v721
    %v723 = vpop.xlane.xlu0 %722
    %v724 = vsel %vm148, %v718, -inf
    %725 = vmax.xlane.f32.xlu0 %v724
    %v726 = vpop.xlane.xlu0 %725
    %v727 = vsub.f32 %v715, %v723
    %v728 = vsub.f32 %v718, %v726
    %v729 = vmul.f32 %v727, 1.442695
    %v730 = vpow.pop %v729
    %v731 = vmul.f32 %v728, 1.442695
    %v732 = vpow.pop %v731
    %v733 = vsel %vm148, %v730, 0.0
    %734 = vadd.xlane.f32.xlu0 %v733
    %v735 = vpop.xlane.xlu0 %734
    %v736 = vsel %vm148, %v732, 0.0
    %737 = vadd.xlane.f32.xlu0 %v736
    %v738 = vpop.xlane.xlu0 %737
    %v739 = vrcp.pop %v735
    %v740 = vrcp.pop %v738
    %v741 = vmul.f32 %v730, %v739
    %v742 = vmul.f32 %v732, %v740
    %v743 = vmul.f32 %v741, %v124
    %v744 = vmul.f32 %v742, %v125
    %v745 = vpack.c.bf16 %v744, %v743
    %746 = vrot.lane.b32.xlu0 %v424, 80
    %v747 = vpop.permute.xlu0 %746
    %v750 = vsel %vm148, %v745, 0
    %752 = vmatprep.subr.bf16.mxu0 0
    %753 = vmatpush1.bf16.msra.mxu0 %v747
    %754 = vmatprep.subr.bf16.mxu0 0
    %755 = vmatpush1.bf16.msra.mxu0 0
    %756 = vmatprep.subr.bf16.mxu0 0
    %757 = vmatpush1.bf16.msra.mxu0 0
    %758 = vmatprep.subr.bf16.mxu0 0
    %759 = vmatpush1.bf16.msra.mxu0 0
    %760 = vmatprep.subr.bf16.mxu0 0
    %761 = vmatpush1.bf16.msra.mxu0 0
    %762 = vmatprep.subr.bf16.mxu0 0
    %763 = vmatpush1.bf16.msra.mxu0 0
    %764 = vmatprep.subr.bf16.mxu0 0
    %765 = vmatpush1.bf16.msra.mxu0 0
    %766 = vmatprep.subr.bf16.mxu0 0
    %767 = vmatpush1.bf16.msra.mxu0 0
    %768 = vmatprep.subr.bf16.mxu0 0
    %769 = vmatpush1.bf16.msra.mxu0 0
    %770 = vmatprep.subr.bf16.mxu0 0
    %771 = vmatpush1.bf16.msra.mxu0 0
    %772 = vmatprep.subr.bf16.mxu0 0
    %773 = vmatpush1.bf16.msra.mxu0 0
    %774 = vmatprep.subr.bf16.mxu0 0
    %775 = vmatpush1.bf16.msra.mxu0 0
    %776 = vmatprep.subr.bf16.mxu0 0
    %777 = vmatpush1.bf16.msra.mxu0 0
    %778 = vmatprep.subr.bf16.mxu0 0
    %779 = vmatpush1.bf16.msra.mxu0 0
    %780 = vmatprep.subr.bf16.mxu0 0
    %781 = vmatpush1.bf16.msra.mxu0 0
    %782 = vmatprep.subr.bf16.mxu0 0
    %783 = vmatpush1.bf16.msra.mxu0 0
    %784 = vmatprep.mubr.bf16.mxu0 0
    %785 = vmatmul.mubr.bf16.gmra.mrb[0].mxu0 %v750
    %v786 = vpop.f32.mrb[0].mxu0
    %v787 = vadd.f32 0.0, %v786
    %v788 = vpop.f32.mrb[0].mxu0
    %v789 = vpop.f32.mrb[0].mxu0
    %v790 = vadd.f32 0.0, %v789
    %v791 = vpop.f32.mrb[0].mxu0
    %792 = vdwg.mxu0
    %793 = vrot.lane.b32.xlu0 %v423, 104
    %v794 = vpop.permute.xlu0 %793
    %795 = vrot.lane.b32.xlu0 %v424, 104
    %v796 = vpop.permute.xlu0 %795
    %v798 = vsel %vm425, %v794, 0
    %v801 = vsel %vm425, %v796, 0
    %803 = vmatprep.subr.bf16.mxu0 0
    %804 = vmatpush1.bf16.xpose.msra.mxu0 %v801
    %805 = vmatprep.subr.bf16.mxu0 0
    %806 = vmatpush1.bf16.xpose.msra.mxu0 0
    %807 = vmatprep.subr.bf16.mxu0 0
    %808 = vmatpush1.bf16.xpose.msra.mxu0 0
    %809 = vmatprep.subr.bf16.mxu0 0
    %810 = vmatpush1.bf16.xpose.msra.mxu0 0
    %811 = vmatprep.subr.bf16.mxu0 0
    %812 = vmatpush1.bf16.xpose.msra.mxu0 0
    %813 = vmatprep.subr.bf16.mxu0 0
    %814 = vmatpush1.bf16.xpose.msra.mxu0 0
    %815 = vmatprep.subr.bf16.mxu0 0
    %816 = vmatpush1.bf16.xpose.msra.mxu0 0
    %817 = vmatprep.subr.bf16.mxu0 0
    %818 = vmatpush1.bf16.xpose.msra.mxu0 0
    %819 = vmatprep.subr.bf16.mxu0 0
    %820 = vmatpush1.bf16.xpose.msra.mxu0 0
    %821 = vmatprep.subr.bf16.mxu0 0
    %822 = vmatpush1.bf16.xpose.msra.mxu0 0
    %823 = vmatprep.subr.bf16.mxu0 0
    %824 = vmatpush1.bf16.xpose.msra.mxu0 0
    %825 = vmatprep.subr.bf16.mxu0 0
    %826 = vmatpush1.bf16.xpose.msra.mxu0 0
    %827 = vmatprep.subr.bf16.mxu0 0
    %828 = vmatpush1.bf16.xpose.msra.mxu0 0
    %829 = vmatprep.subr.bf16.mxu0 0
    %830 = vmatpush1.bf16.xpose.msra.mxu0 0
    %831 = vmatprep.subr.bf16.mxu0 0
    %832 = vmatpush1.bf16.xpose.msra.mxu0 0
    %833 = vmatprep.subr.bf16.mxu0 0
    %834 = vmatpush1.bf16.xpose.msra.mxu0 0
    %835 = vmatprep.mubr.bf16.mxu0 0
    %836 = vmatmul.mubr.bf16.gmra.mrb[0].mxu0 %v798
    %v837 = vpop.f32.mrb[0].mxu0
    %v838 = vadd.f32 %v128, %v837
    %v839 = vpop.f32.mrb[0].mxu0
    %v840 = vpop.f32.mrb[0].mxu0
    %v841 = vadd.f32 %v129, %v840
    %v842 = vpop.f32.mrb[0].mxu0
    %843 = vdwg.mxu0
    %v844 = vsel %vm148, %v838, -inf
    %845 = vmax.xlane.f32.xlu0 %v844
    %v846 = vpop.xlane.xlu0 %845
    %v847 = vsel %vm148, %v841, -inf
    %848 = vmax.xlane.f32.xlu0 %v847
    %v849 = vpop.xlane.xlu0 %848
    %v850 = vsub.f32 %v838, %v846
    %v851 = vsub.f32 %v841, %v849
    %v852 = vmul.f32 %v850, 1.442695
    %v853 = vpow.pop %v852
    %v854 = vmul.f32 %v851, 1.442695
    %v855 = vpow.pop %v854
    %v856 = vsel %vm148, %v853, 0.0
    %857 = vadd.xlane.f32.xlu0 %v856
    %v858 = vpop.xlane.xlu0 %857
    %v859 = vsel %vm148, %v855, 0.0
    %860 = vadd.xlane.f32.xlu0 %v859
    %v861 = vpop.xlane.xlu0 %860
    %v862 = vrcp.pop %v858
    %v863 = vrcp.pop %v861
    %v864 = vmul.f32 %v853, %v862
    %v865 = vmul.f32 %v855, %v863
    %v866 = vmul.f32 %v864, %v124
    %v867 = vmul.f32 %v865, %v125
    %v868 = vpack.c.bf16 %v867, %v866
    %869 = vrot.lane.b32.xlu0 %v424, 72
    %v870 = vpop.permute.xlu0 %869
    %v873 = vsel %vm148, %v868, 0
    %875 = vmatprep.subr.bf16.mxu0 0
    %876 = vmatpush1.bf16.msra.mxu0 %v870
    %877 = vmatprep.subr.bf16.mxu0 0
    %878 = vmatpush1.bf16.msra.mxu0 0
    %879 = vmatprep.subr.bf16.mxu0 0
    %880 = vmatpush1.bf16.msra.mxu0 0
    %881 = vmatprep.subr.bf16.mxu0 0
    %882 = vmatpush1.bf16.msra.mxu0 0
    %883 = vmatprep.subr.bf16.mxu0 0
    %884 = vmatpush1.bf16.msra.mxu0 0
    %885 = vmatprep.subr.bf16.mxu0 0
    %886 = vmatpush1.bf16.msra.mxu0 0
    %887 = vmatprep.subr.bf16.mxu0 0
    %888 = vmatpush1.bf16.msra.mxu0 0
    %889 = vmatprep.subr.bf16.mxu0 0
    %890 = vmatpush1.bf16.msra.mxu0 0
    %891 = vmatprep.subr.bf16.mxu0 0
    %892 = vmatpush1.bf16.msra.mxu0 0
    %893 = vmatprep.subr.bf16.mxu0 0
    %894 = vmatpush1.bf16.msra.mxu0 0
    %895 = vmatprep.subr.bf16.mxu0 0
    %896 = vmatpush1.bf16.msra.mxu0 0
    %897 = vmatprep.subr.bf16.mxu0 0
    %898 = vmatpush1.bf16.msra.mxu0 0
    %899 = vmatprep.subr.bf16.mxu0 0
    %900 = vmatpush1.bf16.msra.mxu0 0
    %901 = vmatprep.subr.bf16.mxu0 0
    %902 = vmatpush1.bf16.msra.mxu0 0
    %903 = vmatprep.subr.bf16.mxu0 0
    %904 = vmatpush1.bf16.msra.mxu0 0
    %905 = vmatprep.subr.bf16.mxu0 0
    %906 = vmatpush1.bf16.msra.mxu0 0
    %907 = vmatprep.mubr.bf16.mxu0 0
    %908 = vmatmul.mubr.bf16.gmra.mrb[0].mxu0 %v873
    %v909 = vpop.f32.mrb[0].mxu0
    %v910 = vadd.f32 0.0, %v909
    %v911 = vpop.f32.mrb[0].mxu0
    %v912 = vpop.f32.mrb[0].mxu0
    %v913 = vadd.f32 0.0, %v912
    %v914 = vpop.f32.mrb[0].mxu0
    %915 = vdwg.mxu0
    %918 = vrot.lane.b32.xlu0 %v664, 8
    %v919 = vpop.permute.xlu0 %918
    %920 = vrot.lane.b32.xlu0 %v667, 8
    %v921 = vpop.permute.xlu0 %920
    %926 = vrot.lane.b32.xlu0 %v787, 16
    %v927 = vpop.permute.xlu0 %926
    %928 = vrot.lane.b32.xlu0 %v790, 16
    %v929 = vpop.permute.xlu0 %928
    %934 = vrot.lane.b32.xlu0 %v910, 24
    %v935 = vpop.permute.xlu0 %934
    %936 = vrot.lane.b32.xlu0 %v913, 24
    %v937 = vpop.permute.xlu0 %936
    %v940 = vsel %vm425, %v540, %v919
    %v941 = vsel %vm425, %v543, %v921
    %v942 = vsel %vm148, %v940, %v927
    %v943 = vsel %vm148, %v941, %v929
    %vm944 = vcmask 195584
    %v945 = vsel %vm944, %v942, %v935
    %v946 = vsel %vm944, %v943, %v937
    %v947 = vadd.f32 %v349, %v945
    %v948 = vadd.f32 %v352, %v946
    %v949 = vpack.c.bf16 %v948, %v947
    %950 = vrot.lane.b32.xlu0 %v307, 96
    %v951 = vpop.permute.xlu0 %950
    %952 = vrot.lane.b32.xlu0 %v308, 96
    %v953 = vpop.permute.xlu0 %952
    %v957 = vsel %vm219, %v949, 0
    %959 = vmatprep.subr.bf16.mxu0 0
    %960 = vmatpush1.bf16.msra.mxu0 %v951
    %961 = vmatprep.subr.bf16.mxu0 0
    %962 = vmatpush1.bf16.msra.mxu0 %v953
    %963 = vmatprep.subr.bf16.mxu0 0
    %964 = vmatpush1.bf16.msra.mxu0 0
    %965 = vmatprep.subr.bf16.mxu0 0
    %966 = vmatpush1.bf16.msra.mxu0 0
    %967 = vmatprep.subr.bf16.mxu0 0
    %968 = vmatpush1.bf16.msra.mxu0 0
    %969 = vmatprep.subr.bf16.mxu0 0
    %970 = vmatpush1.bf16.msra.mxu0 0
    %971 = vmatprep.subr.bf16.mxu0 0
    %972 = vmatpush1.bf16.msra.mxu0 0
    %973 = vmatprep.subr.bf16.mxu0 0
    %974 = vmatpush1.bf16.msra.mxu0 0
    %975 = vmatprep.subr.bf16.mxu0 0
    %976 = vmatpush1.bf16.msra.mxu0 0
    %977 = vmatprep.subr.bf16.mxu0 0
    %978 = vmatpush1.bf16.msra.mxu0 0
    %979 = vmatprep.subr.bf16.mxu0 0
    %980 = vmatpush1.bf16.msra.mxu0 0
    %981 = vmatprep.subr.bf16.mxu0 0
    %982 = vmatpush1.bf16.msra.mxu0 0
    %983 = vmatprep.subr.bf16.mxu0 0
    %984 = vmatpush1.bf16.msra.mxu0 0
    %985 = vmatprep.subr.bf16.mxu0 0
    %986 = vmatpush1.bf16.msra.mxu0 0
    %987 = vmatprep.subr.bf16.mxu0 0
    %988 = vmatpush1.bf16.msra.mxu0 0
    %989 = vmatprep.subr.bf16.mxu0 0
    %990 = vmatpush1.bf16.msra.mxu0 0
    %991 = vmatprep.mubr.bf16.mxu0 0
    %992 = vmatmul.mubr.bf16.gmra.mrb[0].mxu0 %v957
    %v993 = vpop.f32.mrb[0].mxu0
    %v994 = vadd.f32 0.0, %v993
    %v995 = vpop.f32.mrb[0].mxu0
    %v996 = vpop.f32.mrb[0].mxu0
    %v997 = vadd.f32 0.0, %v996
    %v998 = vpop.f32.mrb[0].mxu0
    %999 = vdwg.mxu0
    %v1000 = vmax.f32 %v994, 0.0
    %v1001 = vmax.f32 %v997, 0.0
    %v1002 = vmul.f32 %v1000, %v289
    %v1003 = vmul.f32 %v1001, %v294
    %v1004 = vadd.f32 %v947, %v1002
    %v1005 = vadd.f32 %v948, %v1003
    %s1006 = scalar_lea.vmem %s9, 16
    %v1007 = vld [vmem:[%s1006] sm:$0xf]
    %v1008 = vld [vmem:[%s1006 + $0x4] sm:$0xf]
    %v1009 = vld [vmem:[%s1006 + $0x8] sm:$0xf]
    %v1010 = vld [vmem:[%s1006 + $0xc] sm:$0xf]
    %s1011 = scalar_lea.vmem [#allocation11], 32
    %v1012 = vld [vmem:[%s1011] sm:$0xf]
    %v1013 = vld [vmem:[%s1011 + $0x4] sm:$0xf]
    %v1014 = vld [vmem:[%s1011 + $0x8] sm:$0xf]
    %v1015 = vld [vmem:[%s1011 + $0xc] sm:$0xf]
    %v1016 = vld [vmem:[%s1011 + $0x10] sm:$0xf]
    %v1017 = vld [vmem:[%s1011 + $0x14] sm:$0xf]
    %v1018 = vld [vmem:[%s1011 + $0x18] sm:$0xf]
    %v1019 = vld [vmem:[%s1011 + $0x1c] sm:$0xf]
    %v1020 = vmul.f32 %v1004, %v289
    %v1021 = vmul.f32 %v1005, %v294
    %v1022 = vpack.c.bf16 %v1021, %v1020
    %v1027 = vunpack.c.l.b16 %v1007
    %v1028 = vunpack.c.l.b16 %v1008
    %v1029 = vunpack.c.l.b16 %v1009
    %v1030 = vunpack.c.l.b16 %v1010
    %v1031 = vpack.c.b16 %v1028, %v1027
    %v1032 = vpack.c.b16 %v1030, %v1029
    %v1036 = vsel %vm219, %v1022, 0
    %1038 = vmatprep.subr.bf16.mxu0 0
    %1039 = vmatpush1.bf16.msra.mxu0 %v1031
    %1040 = vmatprep.subr.bf16.mxu0 0
    %1041 = vmatpush1.bf16.msra.mxu0 %v1032
    %1042 = vmatprep.subr.bf16.mxu0 0
    %1043 = vmatpush1.bf16.msra.mxu0 0
    %1044 = vmatprep.subr.bf16.mxu0 0
    %1045 = vmatpush1.bf16.msra.mxu0 0
    %1046 = vmatprep.subr.bf16.mxu0 0
    %1047 = vmatpush1.bf16.msra.mxu0 0
    %1048 = vmatprep.subr.bf16.mxu0 0
    %1049 = vmatpush1.bf16.msra.mxu0 0
    %1050 = vmatprep.subr.bf16.mxu0 0
    %1051 = vmatpush1.bf16.msra.mxu0 0
    %1052 = vmatprep.subr.bf16.mxu0 0
    %1053 = vmatpush1.bf16.msra.mxu0 0
    %1054 = vmatprep.subr.bf16.mxu0 0
    %1055 = vmatpush1.bf16.msra.mxu0 0
    %1056 = vmatprep.subr.bf16.mxu0 0
    %1057 = vmatpush1.bf16.msra.mxu0 0
    %1058 = vmatprep.subr.bf16.mxu0 0
    %1059 = vmatpush1.bf16.msra.mxu0 0
    %1060 = vmatprep.subr.bf16.mxu0 0
    %1061 = vmatpush1.bf16.msra.mxu0 0
    %1062 = vmatprep.subr.bf16.mxu0 0
    %1063 = vmatpush1.bf16.msra.mxu0 0
    %1064 = vmatprep.subr.bf16.mxu0 0
    %1065 = vmatpush1.bf16.msra.mxu0 0
    %1066 = vmatprep.subr.bf16.mxu0 0
    %1067 = vmatpush1.bf16.msra.mxu0 0
    %1068 = vmatprep.subr.bf16.mxu0 0
    %1069 = vmatpush1.bf16.msra.mxu0 0
    %1070 = vmatprep.mubr.bf16.mxu0 0
    %1071 = vmatmul.mubr.bf16.gmra.mrb[0].mxu0 %v1036
    %v1072 = vpop.f32.mrb[0].mxu0
    %v1073 = vadd.f32 0.0, %v1072
    %v1074 = vpop.f32.mrb[0].mxu0
    %v1075 = vpop.f32.mrb[0].mxu0
    %v1076 = vadd.f32 0.0, %v1075
    %v1077 = vpop.f32.mrb[0].mxu0
    %1078 = vdwg.mxu0
    %v1087 = vunpack.c.l.b16 %v1012
    %v1088 = vunpack.c.l.b16 %v1013
    %v1089 = vunpack.c.l.b16 %v1014
    %v1090 = vunpack.c.l.b16 %v1015
    %v1091 = vunpack.c.l.b16 %v1016
    %v1092 = vunpack.c.l.b16 %v1017
    %v1093 = vunpack.c.l.b16 %v1018
    %v1094 = vunpack.c.l.b16 %v1019
    %v1095 = vpack.c.b16 %v1088, %v1087
    %v1096 = vpack.c.b16 %v1090, %v1089
    %v1097 = vpack.c.b16 %v1092, %v1091
    %v1098 = vpack.c.b16 %v1094, %v1093
    %1103 = vmatprep.subr.bf16.mxu0 0
    %1104 = vmatpush1.bf16.msra.mxu0 %v1095
    %1105 = vmatprep.subr.bf16.mxu0 0
    %1106 = vmatpush1.bf16.msra.mxu0 %v1096
    %1107 = vmatprep.subr.bf16.mxu0 0
    %1108 = vmatpush1.bf16.msra.mxu0 %v1097
    %1109 = vmatprep.subr.bf16.mxu0 0
    %1110 = vmatpush1.bf16.msra.mxu0 %v1098
    %1111 = vmatprep.subr.bf16.mxu0 0
    %1112 = vmatpush1.bf16.msra.mxu0 0
    %1113 = vmatprep.subr.bf16.mxu0 0
    %1114 = vmatpush1.bf16.msra.mxu0 0
    %1115 = vmatprep.subr.bf16.mxu0 0
    %1116 = vmatpush1.bf16.msra.mxu0 0
    %1117 = vmatprep.subr.bf16.mxu0 0
    %1118 = vmatpush1.bf16.msra.mxu0 0
    %1119 = vmatprep.subr.bf16.mxu0 0
    %1120 = vmatpush1.bf16.msra.mxu0 0
    %1121 = vmatprep.subr.bf16.mxu0 0
    %1122 = vmatpush1.bf16.msra.mxu0 0
    %1123 = vmatprep.subr.bf16.mxu0 0
    %1124 = vmatpush1.bf16.msra.mxu0 0
    %1125 = vmatprep.subr.bf16.mxu0 0
    %1126 = vmatpush1.bf16.msra.mxu0 0
    %1127 = vmatprep.subr.bf16.mxu0 0
    %1128 = vmatpush1.bf16.msra.mxu0 0
    %1129 = vmatprep.subr.bf16.mxu0 0
    %1130 = vmatpush1.bf16.msra.mxu0 0
    %1131 = vmatprep.subr.bf16.mxu0 0
    %1132 = vmatpush1.bf16.msra.mxu0 0
    %1133 = vmatprep.subr.bf16.mxu0 0
    %1134 = vmatpush1.bf16.msra.mxu0 0
    %1135 = vmatprep.mubr.bf16.mxu0 0
    %1136 = vmatmul.mubr.bf16.gmra.mrb[0].mxu0 %v380
    %v1137 = vpop.f32.mrb[0].mxu0
    %v1138 = vadd.f32 0.0, %v1137
    %v1139 = vpop.f32.mrb[0].mxu0
    %v1140 = vpop.f32.mrb[0].mxu0
    %v1141 = vadd.f32 0.0, %v1140
    %v1142 = vpop.f32.mrb[0].mxu0
    %1143 = vdwg.mxu0
    %v1144 = vpack.c.bf16 %v1076, %v1073
    %v1145 = vpack.c.bf16 %v1141, %v1138
    %v1147 = vsel %vm425, %v1144, 0
    %v1150 = vsel %vm425, %v1145, 0
    %1152 = vmatprep.subr.bf16.mxu0 0
    %1153 = vmatpush1.bf16.xpose.msra.mxu0 %v1150
    %1154 = vmatprep.subr.bf16.mxu0 0
    %1155 = vmatpush1.bf16.xpose.msra.mxu0 0
    %1156 = vmatprep.subr.bf16.mxu0 0
    %1157 = vmatpush1.bf16.xpose.msra.mxu0 0
    %1158 = vmatprep.subr.bf16.mxu0 0
    %1159 = vmatpush1.bf16.xpose.msra.mxu0 0
    %1160 = vmatprep.subr.bf16.mxu0 0
    %1161 = vmatpush1.bf16.xpose.msra.mxu0 0
    %1162 = vmatprep.subr.bf16.mxu0 0
    %1163 = vmatpush1.bf16.xpose.msra.mxu0 0
    %1164 = vmatprep.subr.bf16.mxu0 0
    %1165 = vmatpush1.bf16.xpose.msra.mxu0 0
    %1166 = vmatprep.subr.bf16.mxu0 0
    %1167 = vmatpush1.bf16.xpose.msra.mxu0 0
    %1168 = vmatprep.subr.bf16.mxu0 0
    %1169 = vmatpush1.bf16.xpose.msra.mxu0 0
    %1170 = vmatprep.subr.bf16.mxu0 0
    %1171 = vmatpush1.bf16.xpose.msra.mxu0 0
    %1172 = vmatprep.subr.bf16.mxu0 0
    %1173 = vmatpush1.bf16.xpose.msra.mxu0 0
    %1174 = vmatprep.subr.bf16.mxu0 0
    %1175 = vmatpush1.bf16.xpose.msra.mxu0 0
    %1176 = vmatprep.subr.bf16.mxu0 0
    %1177 = vmatpush1.bf16.xpose.msra.mxu0 0
    %1178 = vmatprep.subr.bf16.mxu0 0
    %1179 = vmatpush1.bf16.xpose.msra.mxu0 0
    %1180 = vmatprep.subr.bf16.mxu0 0
    %1181 = vmatpush1.bf16.xpose.msra.mxu0 0
    %1182 = vmatprep.subr.bf16.mxu0 0
    %1183 = vmatpush1.bf16.xpose.msra.mxu0 0
    %1184 = vmatprep.mubr.bf16.mxu0 0
    %1185 = vmatmul.mubr.bf16.gmra.mrb[0].mxu0 %v1147
    %v1186 = vpop.f32.mrb[0].mxu0
    %v1187 = vadd.f32 %v128, %v1186
    %v1188 = vpop.f32.mrb[0].mxu0
    %v1189 = vpop.f32.mrb[0].mxu0
    %v1190 = vadd.f32 %v129, %v1189
    %v1191 = vpop.f32.mrb[0].mxu0
    %1192 = vdwg.mxu0
    %v1193 = vsel %vm148, %v1187, -inf
    %1194 = vmax.xlane.f32.xlu0 %v1193
    %v1195 = vpop.xlane.xlu0 %1194
    %v1196 = vsel %vm148, %v1190, -inf
    %1197 = vmax.xlane.f32.xlu0 %v1196
    %v1198 = vpop.xlane.xlu0 %1197
    %v1199 = vsub.f32 %v1187, %v1195
    %v1200 = vsub.f32 %v1190, %v1198
    %v1201 = vmul.f32 %v1199, 1.442695
    %v1202 = vpow.pop %v1201
    %v1203 = vmul.f32 %v1200, 1.442695
    %v1204 = vpow.pop %v1203
    %v1205 = vsel %vm148, %v1202, 0.0
    %1206 = vadd.xlane.f32.xlu0 %v1205
    %v1207 = vpop.xlane.xlu0 %1206
    %v1208 = vsel %vm148, %v1204, 0.0
    %1209 = vadd.xlane.f32.xlu0 %v1208
    %v1210 = vpop.xlane.xlu0 %1209
    %v1211 = vrcp.pop %v1207
    %v1212 = vrcp.pop %v1210
    %v1213 = vmul.f32 %v1202, %v1211
    %v1214 = vmul.f32 %v1204, %v1212
    %v1215 = vmul.f32 %v1213, %v124
    %v1216 = vmul.f32 %v1214, %v125
    %v1217 = vpack.c.bf16 %v1216, %v1215
    %1219 = vrot.lane.b32.xlu0 %v1145, 96
    %v1220 = vpop.permute.xlu0 %1219
    %v1223 = vsel %vm148, %v1217, 0
    %1225 = vmatprep.subr.bf16.mxu0 0
    %1226 = vmatpush1.bf16.msra.mxu0 %v1220
    %1227 = vmatprep.subr.bf16.mxu0 0
    %1228 = vmatpush1.bf16.msra.mxu0 0
    %1229 = vmatprep.subr.bf16.mxu0 0
    %1230 = vmatpush1.bf16.msra.mxu0 0
    %1231 = vmatprep.subr.bf16.mxu0 0
    %1232 = vmatpush1.bf16.msra.mxu0 0
    %1233 = vmatprep.subr.bf16.mxu0 0
    %1234 = vmatpush1.bf16.msra.mxu0 0
    %1235 = vmatprep.subr.bf16.mxu0 0
    %1236 = vmatpush1.bf16.msra.mxu0 0
    %1237 = vmatprep.subr.bf16.mxu0 0
    %1238 = vmatpush1.bf16.msra.mxu0 0
    %1239 = vmatprep.subr.bf16.mxu0 0
    %1240 = vmatpush1.bf16.msra.mxu0 0
    %1241 = vmatprep.subr.bf16.mxu0 0
    %1242 = vmatpush1.bf16.msra.mxu0 0
    %1243 = vmatprep.subr.bf16.mxu0 0
    %1244 = vmatpush1.bf16.msra.mxu0 0
    %1245 = vmatprep.subr.bf16.mxu0 0
    %1246 = vmatpush1.bf16.msra.mxu0 0
    %1247 = vmatprep.subr.bf16.mxu0 0
    %1248 = vmatpush1.bf16.msra.mxu0 0
    %1249 = vmatprep.subr.bf16.mxu0 0
    %1250 = vmatpush1.bf16.msra.mxu0 0
    %1251 = vmatprep.subr.bf16.mxu0 0
    %1252 = vmatpush1.bf16.msra.mxu0 0
    %1253 = vmatprep.subr.bf16.mxu0 0
    %1254 = vmatpush1.bf16.msra.mxu0 0
    %1255 = vmatprep.subr.bf16.mxu0 0
    %1256 = vmatpush1.bf16.msra.mxu0 0
    %1257 = vmatprep.mubr.bf16.mxu0 0
    %1258 = vmatmul.mubr.bf16.gmra.mrb[0].mxu0 %v1223
    %v1259 = vpop.f32.mrb[0].mxu0
    %v1260 = vadd.f32 0.0, %v1259
    %v1261 = vpop.f32.mrb[0].mxu0
    %v1262 = vpop.f32.mrb[0].mxu0
    %v1263 = vadd.f32 0.0, %v1262
    %v1264 = vpop.f32.mrb[0].mxu0
    %1265 = vdwg.mxu0
    %1267 = vrot.lane.b32.xlu0 %v1144, 120
    %v1268 = vpop.permute.xlu0 %1267
    %1269 = vrot.lane.b32.xlu0 %v1145, 120
    %v1270 = vpop.permute.xlu0 %1269
    %v1272 = vsel %vm425, %v1268, 0
    %v1275 = vsel %vm425, %v1270, 0
    %1277 = vmatprep.subr.bf16.mxu0 0
    %1278 = vmatpush1.bf16.xpose.msra.mxu0 %v1275
    %1279 = vmatprep.subr.bf16.mxu0 0
    %1280 = vmatpush1.bf16.xpose.msra.mxu0 0
    %1281 = vmatprep.subr.bf16.mxu0 0
    %1282 = vmatpush1.bf16.xpose.msra.mxu0 0
    %1283 = vmatprep.subr.bf16.mxu0 0
    %1284 = vmatpush1.bf16.xpose.msra.mxu0 0
    %1285 = vmatprep.subr.bf16.mxu0 0
    %1286 = vmatpush1.bf16.xpose.msra.mxu0 0
    %1287 = vmatprep.subr.bf16.mxu0 0
    %1288 = vmatpush1.bf16.xpose.msra.mxu0 0
    %1289 = vmatprep.subr.bf16.mxu0 0
    %1290 = vmatpush1.bf16.xpose.msra.mxu0 0
    %1291 = vmatprep.subr.bf16.mxu0 0
    %1292 = vmatpush1.bf16.xpose.msra.mxu0 0
    %1293 = vmatprep.subr.bf16.mxu0 0
    %1294 = vmatpush1.bf16.xpose.msra.mxu0 0
    %1295 = vmatprep.subr.bf16.mxu0 0
    %1296 = vmatpush1.bf16.xpose.msra.mxu0 0
    %1297 = vmatprep.subr.bf16.mxu0 0
    %1298 = vmatpush1.bf16.xpose.msra.mxu0 0
    %1299 = vmatprep.subr.bf16.mxu0 0
    %1300 = vmatpush1.bf16.xpose.msra.mxu0 0
    %1301 = vmatprep.subr.bf16.mxu0 0
    %1302 = vmatpush1.bf16.xpose.msra.mxu0 0
    %1303 = vmatprep.subr.bf16.mxu0 0
    %1304 = vmatpush1.bf16.xpose.msra.mxu0 0
    %1305 = vmatprep.subr.bf16.mxu0 0
    %1306 = vmatpush1.bf16.xpose.msra.mxu0 0
    %1307 = vmatprep.subr.bf16.mxu0 0
    %1308 = vmatpush1.bf16.xpose.msra.mxu0 0
    %1309 = vmatprep.mubr.bf16.mxu0 0
    %1310 = vmatmul.mubr.bf16.gmra.mrb[0].mxu0 %v1272
    %v1311 = vpop.f32.mrb[0].mxu0
    %v1312 = vadd.f32 %v128, %v1311
    %v1313 = vpop.f32.mrb[0].mxu0
    %v1314 = vpop.f32.mrb[0].mxu0
    %v1315 = vadd.f32 %v129, %v1314
    %v1316 = vpop.f32.mrb[0].mxu0
    %1317 = vdwg.mxu0
    %v1318 = vsel %vm148, %v1312, -inf
    %1319 = vmax.xlane.f32.xlu0 %v1318
    %v1320 = vpop.xlane.xlu0 %1319
    %v1321 = vsel %vm148, %v1315, -inf
    %1322 = vmax.xlane.f32.xlu0 %v1321
    %v1323 = vpop.xlane.xlu0 %1322
    %v1324 = vsub.f32 %v1312, %v1320
    %v1325 = vsub.f32 %v1315, %v1323
    %v1326 = vmul.f32 %v1324, 1.442695
    %v1327 = vpow.pop %v1326
    %v1328 = vmul.f32 %v1325, 1.442695
    %v1329 = vpow.pop %v1328
    %v1330 = vsel %vm148, %v1327, 0.0
    %1331 = vadd.xlane.f32.xlu0 %v1330
    %v1332 = vpop.xlane.xlu0 %1331
    %v1333 = vsel %vm148, %v1329, 0.0
    %1334 = vadd.xlane.f32.xlu0 %v1333
    %v1335 = vpop.xlane.xlu0 %1334
    %v1336 = vrcp.pop %v1332
    %v1337 = vrcp.pop %v1335
    %v1338 = vmul.f32 %v1327, %v1336
    %v1339 = vmul.f32 %v1329, %v1337
    %v1340 = vmul.f32 %v1338, %v124
    %v1341 = vmul.f32 %v1339, %v125
    %v1342 = vpack.c.bf16 %v1341, %v1340
    %1343 = vrot.lane.b32.xlu0 %v1145, 88
    %v1344 = vpop.permute.xlu0 %1343
    %v1347 = vsel %vm148, %v1342, 0
    %1349 = vmatprep.subr.bf16.mxu0 0
    %1350 = vmatpush1.bf16.msra.mxu0 %v1344
    %1351 = vmatprep.subr.bf16.mxu0 0
    %1352 = vmatpush1.bf16.msra.mxu0 0
    %1353 = vmatprep.subr.bf16.mxu0 0
    %1354 = vmatpush1.bf16.msra.mxu0 0
    %1355 = vmatprep.subr.bf16.mxu0 0
    %1356 = vmatpush1.bf16.msra.mxu0 0
    %1357 = vmatprep.subr.bf16.mxu0 0
    %1358 = vmatpush1.bf16.msra.mxu0 0
    %1359 = vmatprep.subr.bf16.mxu0 0
    %1360 = vmatpush1.bf16.msra.mxu0 0
    %1361 = vmatprep.subr.bf16.mxu0 0
    %1362 = vmatpush1.bf16.msra.mxu0 0
    %1363 = vmatprep.subr.bf16.mxu0 0
    %1364 = vmatpush1.bf16.msra.mxu0 0
    %1365 = vmatprep.subr.bf16.mxu0 0
    %1366 = vmatpush1.bf16.msra.mxu0 0
    %1367 = vmatprep.subr.bf16.mxu0 0
    %1368 = vmatpush1.bf16.msra.mxu0 0
    %1369 = vmatprep.subr.bf16.mxu0 0
    %1370 = vmatpush1.bf16.msra.mxu0 0
    %1371 = vmatprep.subr.bf16.mxu0 0
    %1372 = vmatpush1.bf16.msra.mxu0 0
    %1373 = vmatprep.subr.bf16.mxu0 0
    %1374 = vmatpush1.bf16.msra.mxu0 0
    %1375 = vmatprep.subr.bf16.mxu0 0
    %1376 = vmatpush1.bf16.msra.mxu0 0
    %1377 = vmatprep.subr.bf16.mxu0 0
    %1378 = vmatpush1.bf16.msra.mxu0 0
    %1379 = vmatprep.subr.bf16.mxu0 0
    %1380 = vmatpush1.bf16.msra.mxu0 0
    %1381 = vmatprep.mubr.bf16.mxu0 0
    %1382 = vmatmul.mubr.bf16.gmra.mrb[0].mxu0 %v1347
    %v1383 = vpop.f32.mrb[0].mxu0
    %v1384 = vadd.f32 0.0, %v1383
    %v1385 = vpop.f32.mrb[0].mxu0
    %v1386 = vpop.f32.mrb[0].mxu0
    %v1387 = vadd.f32 0.0, %v1386
    %v1388 = vpop.f32.mrb[0].mxu0
    %1389 = vdwg.mxu0
    %1390 = vrot.lane.b32.xlu0 %v1144, 112
    %v1391 = vpop.permute.xlu0 %1390
    %1392 = vrot.lane.b32.xlu0 %v1145, 112
    %v1393 = vpop.permute.xlu0 %1392
    %v1395 = vsel %vm425, %v1391, 0
    %v1398 = vsel %vm425, %v1393, 0
    %1400 = vmatprep.subr.bf16.mxu0 0
    %1401 = vmatpush1.bf16.xpose.msra.mxu0 %v1398
    %1402 = vmatprep.subr.bf16.mxu0 0
    %1403 = vmatpush1.bf16.xpose.msra.mxu0 0
    %1404 = vmatprep.subr.bf16.mxu0 0
    %1405 = vmatpush1.bf16.xpose.msra.mxu0 0
    %1406 = vmatprep.subr.bf16.mxu0 0
    %1407 = vmatpush1.bf16.xpose.msra.mxu0 0
    %1408 = vmatprep.subr.bf16.mxu0 0
    %1409 = vmatpush1.bf16.xpose.msra.mxu0 0
    %1410 = vmatprep.subr.bf16.mxu0 0
    %1411 = vmatpush1.bf16.xpose.msra.mxu0 0
    %1412 = vmatprep.subr.bf16.mxu0 0
    %1413 = vmatpush1.bf16.xpose.msra.mxu0 0
    %1414 = vmatprep.subr.bf16.mxu0 0
    %1415 = vmatpush1.bf16.xpose.msra.mxu0 0
    %1416 = vmatprep.subr.bf16.mxu0 0
    %1417 = vmatpush1.bf16.xpose.msra.mxu0 0
    %1418 = vmatprep.subr.bf16.mxu0 0
    %1419 = vmatpush1.bf16.xpose.msra.mxu0 0
    %1420 = vmatprep.subr.bf16.mxu0 0
    %1421 = vmatpush1.bf16.xpose.msra.mxu0 0
    %1422 = vmatprep.subr.bf16.mxu0 0
    %1423 = vmatpush1.bf16.xpose.msra.mxu0 0
    %1424 = vmatprep.subr.bf16.mxu0 0
    %1425 = vmatpush1.bf16.xpose.msra.mxu0 0
    %1426 = vmatprep.subr.bf16.mxu0 0
    %1427 = vmatpush1.bf16.xpose.msra.mxu0 0
    %1428 = vmatprep.subr.bf16.mxu0 0
    %1429 = vmatpush1.bf16.xpose.msra.mxu0 0
    %1430 = vmatprep.subr.bf16.mxu0 0
    %1431 = vmatpush1.bf16.xpose.msra.mxu0 0
    %1432 = vmatprep.mubr.bf16.mxu0 0
    %1433 = vmatmul.mubr.bf16.gmra.mrb[0].mxu0 %v1395
    %v1434 = vpop.f32.mrb[0].mxu0
    %v1435 = vadd.f32 %v128, %v1434
    %v1436 = vpop.f32.mrb[0].mxu0
    %v1437 = vpop.f32.mrb[0].mxu0
    %v1438 = vadd.f32 %v129, %v1437
    %v1439 = vpop.f32.mrb[0].mxu0
    %1440 = vdwg.mxu0
    %v1441 = vsel %vm148, %v1435, -inf
    %1442 = vmax.xlane.f32.xlu0 %v1441
    %v1443 = vpop.xlane.xlu0 %1442
    %v1444 = vsel %vm148, %v1438, -inf
    %1445 = vmax.xlane.f32.xlu0 %v1444
    %v1446 = vpop.xlane.xlu0 %1445
    %v1447 = vsub.f32 %v1435, %v1443
    %v1448 = vsub.f32 %v1438, %v1446
    %v1449 = vmul.f32 %v1447, 1.442695
    %v1450 = vpow.pop %v1449
    %v1451 = vmul.f32 %v1448, 1.442695
    %v1452 = vpow.pop %v1451
    %v1453 = vsel %vm148, %v1450, 0.0
    %1454 = vadd.xlane.f32.xlu0 %v1453
    %v1455 = vpop.xlane.xlu0 %1454
    %v1456 = vsel %vm148, %v1452, 0.0
    %1457 = vadd.xlane.f32.xlu0 %v1456
    %v1458 = vpop.xlane.xlu0 %1457
    %v1459 = vrcp.pop %v1455
    %v1460 = vrcp.pop %v1458
    %v1461 = vmul.f32 %v1450, %v1459
    %v1462 = vmul.f32 %v1452, %v1460
    %v1463 = vmul.f32 %v1461, %v124
    %v1464 = vmul.f32 %v1462, %v125
    %v1465 = vpack.c.bf16 %v1464, %v1463
    %1466 = vrot.lane.b32.xlu0 %v1145, 80
    %v1467 = vpop.permute.xlu0 %1466
    %v1470 = vsel %vm148, %v1465, 0
    %1472 = vmatprep.subr.bf16.mxu0 0
    %1473 = vmatpush1.bf16.msra.mxu0 %v1467
    %1474 = vmatprep.subr.bf16.mxu0 0
    %1475 = vmatpush1.bf16.msra.mxu0 0
    %1476 = vmatprep.subr.bf16.mxu0 0
    %1477 = vmatpush1.bf16.msra.mxu0 0
    %1478 = vmatprep.subr.bf16.mxu0 0
    %1479 = vmatpush1.bf16.msra.mxu0 0
    %1480 = vmatprep.subr.bf16.mxu0 0
    %1481 = vmatpush1.bf16.msra.mxu0 0
    %1482 = vmatprep.subr.bf16.mxu0 0
    %1483 = vmatpush1.bf16.msra.mxu0 0
    %1484 = vmatprep.subr.bf16.mxu0 0
    %1485 = vmatpush1.bf16.msra.mxu0 0
    %1486 = vmatprep.subr.bf16.mxu0 0
    %1487 = vmatpush1.bf16.msra.mxu0 0
    %1488 = vmatprep.subr.bf16.mxu0 0
    %1489 = vmatpush1.bf16.msra.mxu0 0
    %1490 = vmatprep.subr.bf16.mxu0 0
    %1491 = vmatpush1.bf16.msra.mxu0 0
    %1492 = vmatprep.subr.bf16.mxu0 0
    %1493 = vmatpush1.bf16.msra.mxu0 0
    %1494 = vmatprep.subr.bf16.mxu0 0
    %1495 = vmatpush1.bf16.msra.mxu0 0
    %1496 = vmatprep.subr.bf16.mxu0 0
    %1497 = vmatpush1.bf16.msra.mxu0 0
    %1498 = vmatprep.subr.bf16.mxu0 0
    %1499 = vmatpush1.bf16.msra.mxu0 0
    %1500 = vmatprep.subr.bf16.mxu0 0
    %1501 = vmatpush1.bf16.msra.mxu0 0
    %1502 = vmatprep.subr.bf16.mxu0 0
    %1503 = vmatpush1.bf16.msra.mxu0 0
    %1504 = vmatprep.mubr.bf16.mxu0 0
    %1505 = vmatmul.mubr.bf16.gmra.mrb[0].mxu0 %v1470
    %v1506 = vpop.f32.mrb[0].mxu0
    %v1507 = vadd.f32 0.0, %v1506
    %v1508 = vpop.f32.mrb[0].mxu0
    %v1509 = vpop.f32.mrb[0].mxu0
    %v1510 = vadd.f32 0.0, %v1509
    %v1511 = vpop.f32.mrb[0].mxu0
    %1512 = vdwg.mxu0
    %1513 = vrot.lane.b32.xlu0 %v1144, 104
    %v1514 = vpop.permute.xlu0 %1513
    %1515 = vrot.lane.b32.xlu0 %v1145, 104
    %v1516 = vpop.permute.xlu0 %1515
    %v1518 = vsel %vm425, %v1514, 0
    %v1521 = vsel %vm425, %v1516, 0
    %1523 = vmatprep.subr.bf16.mxu0 0
    %1524 = vmatpush1.bf16.xpose.msra.mxu0 %v1521
    %1525 = vmatprep.subr.bf16.mxu0 0
    %1526 = vmatpush1.bf16.xpose.msra.mxu0 0
    %1527 = vmatprep.subr.bf16.mxu0 0
    %1528 = vmatpush1.bf16.xpose.msra.mxu0 0
    %1529 = vmatprep.subr.bf16.mxu0 0
    %1530 = vmatpush1.bf16.xpose.msra.mxu0 0
    %1531 = vmatprep.subr.bf16.mxu0 0
    %1532 = vmatpush1.bf16.xpose.msra.mxu0 0
    %1533 = vmatprep.subr.bf16.mxu0 0
    %1534 = vmatpush1.bf16.xpose.msra.mxu0 0
    %1535 = vmatprep.subr.bf16.mxu0 0
    %1536 = vmatpush1.bf16.xpose.msra.mxu0 0
    %1537 = vmatprep.subr.bf16.mxu0 0
    %1538 = vmatpush1.bf16.xpose.msra.mxu0 0
    %1539 = vmatprep.subr.bf16.mxu0 0
    %1540 = vmatpush1.bf16.xpose.msra.mxu0 0
    %1541 = vmatprep.subr.bf16.mxu0 0
    %1542 = vmatpush1.bf16.xpose.msra.mxu0 0
    %1543 = vmatprep.subr.bf16.mxu0 0
    %1544 = vmatpush1.bf16.xpose.msra.mxu0 0
    %1545 = vmatprep.subr.bf16.mxu0 0
    %1546 = vmatpush1.bf16.xpose.msra.mxu0 0
    %1547 = vmatprep.subr.bf16.mxu0 0
    %1548 = vmatpush1.bf16.xpose.msra.mxu0 0
    %1549 = vmatprep.subr.bf16.mxu0 0
    %1550 = vmatpush1.bf16.xpose.msra.mxu0 0
    %1551 = vmatprep.subr.bf16.mxu0 0
    %1552 = vmatpush1.bf16.xpose.msra.mxu0 0
    %1553 = vmatprep.subr.bf16.mxu0 0
    %1554 = vmatpush1.bf16.xpose.msra.mxu0 0
    %1555 = vmatprep.mubr.bf16.mxu0 0
    %1556 = vmatmul.mubr.bf16.gmra.mrb[0].mxu0 %v1518
    %v1557 = vpop.f32.mrb[0].mxu0
    %v1558 = vadd.f32 %v128, %v1557
    %v1559 = vpop.f32.mrb[0].mxu0
    %v1560 = vpop.f32.mrb[0].mxu0
    %v1561 = vadd.f32 %v129, %v1560
    %v1562 = vpop.f32.mrb[0].mxu0
    %1563 = vdwg.mxu0
    %v1564 = vsel %vm148, %v1558, -inf
    %1565 = vmax.xlane.f32.xlu0 %v1564
    %v1566 = vpop.xlane.xlu0 %1565
    %v1567 = vsel %vm148, %v1561, -inf
    %1568 = vmax.xlane.f32.xlu0 %v1567
    %v1569 = vpop.xlane.xlu0 %1568
    %v1570 = vsub.f32 %v1558, %v1566
    %v1571 = vsub.f32 %v1561, %v1569
    %v1572 = vmul.f32 %v1570, 1.442695
    %v1573 = vpow.pop %v1572
    %v1574 = vmul.f32 %v1571, 1.442695
    %v1575 = vpow.pop %v1574
    %v1576 = vsel %vm148, %v1573, 0.0
    %1577 = vadd.xlane.f32.xlu0 %v1576
    %v1578 = vpop.xlane.xlu0 %1577
    %v1579 = vsel %vm148, %v1575, 0.0
    %1580 = vadd.xlane.f32.xlu0 %v1579
    %v1581 = vpop.xlane.xlu0 %1580
    %v1582 = vrcp.pop %v1578
    %v1583 = vrcp.pop %v1581
    %v1584 = vmul.f32 %v1573, %v1582
    %v1585 = vmul.f32 %v1575, %v1583
    %v1586 = vmul.f32 %v1584, %v124
    %v1587 = vmul.f32 %v1585, %v125
    %v1588 = vpack.c.bf16 %v1587, %v1586
    %1589 = vrot.lane.b32.xlu0 %v1145, 72
    %v1590 = vpop.permute.xlu0 %1589
    %v1593 = vsel %vm148, %v1588, 0
    %1595 = vmatprep.subr.bf16.mxu0 0
    %1596 = vmatpush1.bf16.msra.mxu0 %v1590
    %1597 = vmatprep.subr.bf16.mxu0 0
    %1598 = vmatpush1.bf16.msra.mxu0 0
    %1599 = vmatprep.subr.bf16.mxu0 0
    %1600 = vmatpush1.bf16.msra.mxu0 0
    %1601 = vmatprep.subr.bf16.mxu0 0
    %1602 = vmatpush1.bf16.msra.mxu0 0
    %1603 = vmatprep.subr.bf16.mxu0 0
    %1604 = vmatpush1.bf16.msra.mxu0 0
    %1605 = vmatprep.subr.bf16.mxu0 0
    %1606 = vmatpush1.bf16.msra.mxu0 0
    %1607 = vmatprep.subr.bf16.mxu0 0
    %1608 = vmatpush1.bf16.msra.mxu0 0
    %1609 = vmatprep.subr.bf16.mxu0 0
    %1610 = vmatpush1.bf16.msra.mxu0 0
    %1611 = vmatprep.subr.bf16.mxu0 0
    %1612 = vmatpush1.bf16.msra.mxu0 0
    %1613 = vmatprep.subr.bf16.mxu0 0
    %1614 = vmatpush1.bf16.msra.mxu0 0
    %1615 = vmatprep.subr.bf16.mxu0 0
    %1616 = vmatpush1.bf16.msra.mxu0 0
    %1617 = vmatprep.subr.bf16.mxu0 0
    %1618 = vmatpush1.bf16.msra.mxu0 0
    %1619 = vmatprep.subr.bf16.mxu0 0
    %1620 = vmatpush1.bf16.msra.mxu0 0
    %1621 = vmatprep.subr.bf16.mxu0 0
    %1622 = vmatpush1.bf16.msra.mxu0 0
    %1623 = vmatprep.subr.bf16.mxu0 0
    %1624 = vmatpush1.bf16.msra.mxu0 0
    %1625 = vmatprep.subr.bf16.mxu0 0
    %1626 = vmatpush1.bf16.msra.mxu0 0
    %1627 = vmatprep.mubr.bf16.mxu0 0
    %1628 = vmatmul.mubr.bf16.gmra.mrb[0].mxu0 %v1593
    %v1629 = vpop.f32.mrb[0].mxu0
    %v1630 = vadd.f32 0.0, %v1629
    %v1631 = vpop.f32.mrb[0].mxu0
    %v1632 = vpop.f32.mrb[0].mxu0
    %v1633 = vadd.f32 0.0, %v1632
    %v1634 = vpop.f32.mrb[0].mxu0
    %1635 = vdwg.mxu0
    %1638 = vrot.lane.b32.xlu0 %v1384, 8
    %v1639 = vpop.permute.xlu0 %1638
    %1640 = vrot.lane.b32.xlu0 %v1387, 8
    %v1641 = vpop.permute.xlu0 %1640
    %1646 = vrot.lane.b32.xlu0 %v1507, 16
    %v1647 = vpop.permute.xlu0 %1646
    %1648 = vrot.lane.b32.xlu0 %v1510, 16
    %v1649 = vpop.permute.xlu0 %1648
    %1654 = vrot.lane.b32.xlu0 %v1630, 24
    %v1655 = vpop.permute.xlu0 %1654
    %1656 = vrot.lane.b32.xlu0 %v1633, 24
    %v1657 = vpop.permute.xlu0 %1656
    %v1660 = vsel %vm425, %v1260, %v1639
    %v1661 = vsel %vm425, %v1263, %v1641
    %v1662 = vsel %vm148, %v1660, %v1647
    %v1663 = vsel %vm148, %v1661, %v1649
    %v1664 = vsel %vm944, %v1662, %v1655
    %v1665 = vsel %vm944, %v1663, %v1657
    %v1666 = vadd.f32 %v1073, %v1664
    %v1667 = vadd.f32 %v1076, %v1665
    %v1668 = vpack.c.bf16 %v1667, %v1666
    %1669 = vrot.lane.b32.xlu0 %v1031, 96
    %v1670 = vpop.permute.xlu0 %1669
    %1671 = vrot.lane.b32.xlu0 %v1032, 96
    %v1672 = vpop.permute.xlu0 %1671
    %v1676 = vsel %vm219, %v1668, 0
    %1678 = vmatprep.subr.bf16.mxu0 0
    %1679 = vmatpush1.bf16.msra.mxu0 %v1670
    %1680 = vmatprep.subr.bf16.mxu0 0
    %1681 = vmatpush1.bf16.msra.mxu0 %v1672
    %1682 = vmatprep.subr.bf16.mxu0 0
    %1683 = vmatpush1.bf16.msra.mxu0 0
    %1684 = vmatprep.subr.bf16.mxu0 0
    %1685 = vmatpush1.bf16.msra.mxu0 0
    %1686 = vmatprep.subr.bf16.mxu0 0
    %1687 = vmatpush1.bf16.msra.mxu0 0
    %1688 = vmatprep.subr.bf16.mxu0 0
    %1689 = vmatpush1.bf16.msra.mxu0 0
    %1690 = vmatprep.subr.bf16.mxu0 0
    %1691 = vmatpush1.bf16.msra.mxu0 0
    %1692 = vmatprep.subr.bf16.mxu0 0
    %1693 = vmatpush1.bf16.msra.mxu0 0
    %1694 = vmatprep.subr.bf16.mxu0 0
    %1695 = vmatpush1.bf16.msra.mxu0 0
    %1696 = vmatprep.subr.bf16.mxu0 0
    %1697 = vmatpush1.bf16.msra.mxu0 0
    %1698 = vmatprep.subr.bf16.mxu0 0
    %1699 = vmatpush1.bf16.msra.mxu0 0
    %1700 = vmatprep.subr.bf16.mxu0 0
    %1701 = vmatpush1.bf16.msra.mxu0 0
    %1702 = vmatprep.subr.bf16.mxu0 0
    %1703 = vmatpush1.bf16.msra.mxu0 0
    %1704 = vmatprep.subr.bf16.mxu0 0
    %1705 = vmatpush1.bf16.msra.mxu0 0
    %1706 = vmatprep.subr.bf16.mxu0 0
    %1707 = vmatpush1.bf16.msra.mxu0 0
    %1708 = vmatprep.subr.bf16.mxu0 0
    %1709 = vmatpush1.bf16.msra.mxu0 0
    %1710 = vmatprep.mubr.bf16.mxu0 0
    %1711 = vmatmul.mubr.bf16.gmra.mrb[0].mxu0 %v1676
    %v1712 = vpop.f32.mrb[0].mxu0
    %v1713 = vadd.f32 0.0, %v1712
    %v1714 = vpop.f32.mrb[0].mxu0
    %v1715 = vpop.f32.mrb[0].mxu0
    %v1716 = vadd.f32 0.0, %v1715
    %v1717 = vpop.f32.mrb[0].mxu0
    %1718 = vdwg.mxu0
    %v1719 = vmax.f32 %v1713, 0.0
    %v1720 = vmax.f32 %v1716, 0.0
    %v1721 = vmul.f32 %v1719, %v289
    %v1722 = vmul.f32 %v1720, %v294
    %v1723 = vadd.f32 %v1666, %v1721
    %v1724 = vadd.f32 %v1667, %v1722
    %1725 = vst.msk [vmem:[#allocation13] sm:$0xff] %vm219, %v1723
    %1726 = vst.msk [vmem:[#allocation13 + $0x8] sm:$0xff] %vm219, %v1724
    // Predicated region
    $region70: #{tpu_custom_call.1} parent=1 // pred_check
      _
    $region71: #{tpu_custom_call.1} parent=1 // pred_check_branch
      %1728 = sbr.rel (0) target = $region73
    $region72: #{tpu_custom_call.1} parent=1 // pred_region
      %s1730 = ssub.s32 256, 256
      %1731 = vsyncadd [#allocation4], %s1730
      %s1732 = sshll.u32 [#allocation13], 4
      %s1733 = int_to_ptr.vmem [resolvable:$true] %s1732
      %1738 = dma.vmem_to_hbm [thread:$0]  %s1733, 256, %s11, [#allocation4], 128, 128, 8
    $region73: #{tpu_custom_call.1} parent=1 // pred_fallthru
      _
    // Predicated region
    $region74: #{tpu_custom_call.1} parent=1 // pred_check
      _
    $region75: #{tpu_custom_call.1} parent=1 // pred_check_branch
      %1740 = sbr.rel (0) target = $region77
    $region76: #{tpu_custom_call.1} parent=1 // pred_region
      %1741 = dma.done [#allocation4], 256
    $region77: #{tpu_custom_call.1} parent=1 // pred_fallthru
      _
    %1742 = vsyncpa [#allocation3], 1
    %1743 = vsyncpa [#allocation6], 1
    %1744 = vsyncpa [#allocation9], 1
    %1745 = vsyncpa [#allocation12], 1
    %1746 = vsyncpa [#allocation4], 1

</llo_original>
